<compile_context>
chip_gen: v5e
topology: v5e:2x2
jax: 0.10.0
libtpu: 0.0.40
codegen_flags: <defaults>
</compile_context>

<pallas_src>
import functools

import jax
import jax.numpy as jnp
import numpy as np
from jax.experimental import pallas as pl
from jax.experimental.pallas import tpu as pltpu


# ---------------------------------------------------------------------------
# Fused kernel: all LSTM layers + last-timestep FC in one invocation.
# refs layout: x(T*B, E), [w_ih_t(Din,4H), w_hh_t(H,4H), bias(1,4H)] * L,
#              fc_w_t(H,Cpad), fc_b(1,Cpad), out(B,Cpad), seq_scr(T*B,H).
# PyTorch gate order along the 4H axis: [i | f | g | o].
# ---------------------------------------------------------------------------
def _tweet_lstm_fc_kernel(num_layers, seq_len, hidden_dim, batch, *refs):
    n_w = 3 * num_layers
    x_ref = refs[0]
    layer_refs = refs[1:1 + n_w]
    fcw_ref = refs[1 + n_w]
    fcb_ref = refs[2 + n_w]
    o_ref = refs[3 + n_w]
    seq_scr = refs[4 + n_w]          # VMEM (T*B, H): inter-layer hidden seq

    B = batch
    H = hidden_dim
    T = seq_len

    h = None
    for layer in range(num_layers):
        w_ih = layer_refs[3 * layer][...]        # (Din, 4H)
        w_hh = layer_refs[3 * layer + 1][...]    # (H,   4H)
        bias = layer_refs[3 * layer + 2][...]    # (1,   4H)
        is_last = layer == num_layers - 1

        # One batched input projection for the whole sequence (bias folded in).
        x_all = x_ref[...] if layer == 0 else seq_scr[...]       # (T*B, Din)
        gx = (jnp.dot(x_all, w_ih, preferred_element_type=jnp.float32)
              + bias)                                            # (T*B, 4H)

        h = jnp.zeros((B, H), jnp.float32)
        c = jnp.zeros((B, H), jnp.float32)
        for t in range(T):                       # static unroll; T is small
            gates = gx[t * B:(t + 1) * B]                        # (B, 4H)
            if t > 0:                            # h0 == 0 -> skip dead matmul
                gates = gates + jnp.dot(
                    h, w_hh, preferred_element_type=jnp.float32)
            i_g = jax.nn.sigmoid(gates[:, 0 * H:1 * H])
            f_g = jax.nn.sigmoid(gates[:, 1 * H:2 * H])
            g_g = jnp.tanh(gates[:, 2 * H:3 * H])
            o_g = jax.nn.sigmoid(gates[:, 3 * H:4 * H])
            c = f_g * c + i_g * g_g
            h = o_g * jnp.tanh(c)
            if not is_last:
                seq_scr[pl.ds(t * B, B), :] = h  # stays in VMEM for next layer

    # Final FC on the last timestep's hidden state only
    # (== out[:, -1, :] @ W.T + b), lane-padded to 128 for a dense store.
    o_ref[...] = (jnp.dot(h, fcw_ref[...], preferred_element_type=jnp.float32)
                  + fcb_ref[...])


# ---------------------------------------------------------------------------
# Full TweetLSTM forward (embedding gather is plain-JAX glue)
# ---------------------------------------------------------------------------
def tweet_lstm_forward(token_ids, params):
    """token_ids: (B, T) int32. Returns logits (B, num_classes)."""
    B, T = token_ids.shape
    E = params["embedding"].shape[1]
    H = params["lstm_layers"][0]["w_hh_t"].shape[0]
    C = params["fc_w_t"].shape[1]
    num_layers = len(params["lstm_layers"])

    # Gather directly into time-major (T, B, E) (no separate transpose pass).
    # F.dropout with training=False -> identity (p=0.0002 irrelevant at eval).
    x = params["embedding"][token_ids.T].astype(jnp.float32)

    # Pad batch to the f32 sublane count (8) so vector work is unmasked.
    B_pad = ((B + 7) // 8) * 8
    if B_pad != B:
        x = jnp.pad(x, ((0, 0), (0, B_pad - B), (0, 0)))
    x = x.reshape(T * B_pad, E)                  # flat slab; static slices in-kernel

    # Pad FC output lanes to 128 for an unmasked, lane-dense output store.
    C_pad = ((C + 127) // 128) * 128
    fc_w = jnp.pad(params["fc_w_t"], ((0, 0), (0, C_pad - C)))
    fc_b = jnp.pad(params["fc_b"], ((0, 0), (0, C_pad - C)))

    args = [x]
    in_specs = [pl.BlockSpec((T * B_pad, E), lambda i: (0, 0))]
    for layer in params["lstm_layers"]:
        args += [layer["w_ih_t"], layer["w_hh_t"], layer["bias"]]
        in_specs += [
            pl.BlockSpec(layer["w_ih_t"].shape, lambda i: (0, 0)),
            pl.BlockSpec(layer["w_hh_t"].shape, lambda i: (0, 0)),
            pl.BlockSpec(layer["bias"].shape, lambda i: (0, 0)),
        ]
    args += [fc_w, fc_b]
    in_specs += [
        pl.BlockSpec((H, C_pad), lambda i: (0, 0)),
        pl.BlockSpec((1, C_pad), lambda i: (0, 0)),
    ]

    kernel = functools.partial(_tweet_lstm_fc_kernel, num_layers, T, H, B_pad)

    logits_pad = pl.pallas_call(
        kernel,
        out_shape=jax.ShapeDtypeStruct((B_pad, C_pad), jnp.float32),
        grid_spec=pltpu.PrefetchScalarGridSpec(
            num_scalar_prefetch=0,
            grid=(1,),
            in_specs=in_specs,
            out_specs=pl.BlockSpec((B_pad, C_pad), lambda i: (0, 0)),
            scratch_shapes=[pltpu.VMEM((T * B_pad, H), jnp.float32)],
        ),
        compiler_params=pltpu.CompilerParams(
            dimension_semantics=("arbitrary",)),
    )(*args)

    return logits_pad[:B, :C]


# ---------------------------------------------------------------------------
# Deterministic parameter init (PyTorch-style U(-1/sqrt(H), 1/sqrt(H)))
# ---------------------------------------------------------------------------
def init_params(key, vocab_size, embedding_dim, hidden_dim, num_layers, num_classes):
    k = 1.0 / np.sqrt(hidden_dim)
    keys = jax.random.split(key, 2 + 4 * num_layers + 2)
    it = iter(keys)

    params = {}
    params["embedding"] = jax.random.normal(
        next(it), (vocab_size, embedding_dim), jnp.float32)

    layers = []
    for layer in range(num_layers):
        in_dim = embedding_dim if layer == 0 else hidden_dim
        w_ih = jax.random.uniform(next(it), (4 * hidden_dim, in_dim),
                                  jnp.float32, -k, k)
        w_hh = jax.random.uniform(next(it), (4 * hidden_dim, hidden_dim),
                                  jnp.float32, -k, k)
        b_ih = jax.random.uniform(next(it), (4 * hidden_dim,), jnp.float32, -k, k)
        b_hh = jax.random.uniform(next(it), (4 * hidden_dim,), jnp.float32, -k, k)
        layers.append({
            "w_ih_t": w_ih.T,                     # (in_dim, 4H)
            "w_hh_t": w_hh.T,                     # (H, 4H)
            "bias": (b_ih + b_hh)[None, :],       # (1, 4H)
        })
    params["lstm_layers"] = layers

    kf = 1.0 / np.sqrt(hidden_dim)
    fc_w = jax.random.uniform(next(it), (num_classes, hidden_dim),
                              jnp.float32, -kf, kf)
    fc_b = jax.random.uniform(next(it), (num_classes,), jnp.float32, -kf, kf)
    params["fc_w_t"] = fc_w.T                     # (H, C)
    params["fc_b"] = fc_b[None, :]                # (1, C)
    return params


# ---------------------------------------------------------------------------
# Pure-JAX reference (lax.scan LSTM) for correctness check
# ---------------------------------------------------------------------------
def reference_forward(token_ids, params):
    emb = params["embedding"][token_ids]
    x = jnp.transpose(emb, (1, 0, 2)).astype(jnp.float32)  # (T, B, E)
    B = token_ids.shape[0]

    for layer in params["lstm_layers"]:
        H = layer["w_hh_t"].shape[0]

        def step(carry, x_t, layer=layer, H=H):
            h, c = carry
            gates = x_t @ layer["w_ih_t"] + h @ layer["w_hh_t"] + layer["bias"]
            i = jax.nn.sigmoid(gates[:, 0 * H:1 * H])
            f = jax.nn.sigmoid(gates[:, 1 * H:2 * H])
            g = jnp.tanh(gates[:, 2 * H:3 * H])
            o = jax.nn.sigmoid(gates[:, 3 * H:4 * H])
            c_new = f * c + i * g
            h_new = o * jnp.tanh(c_new)
            return (h_new, c_new), h_new

        init = (jnp.zeros((B, H), jnp.float32), jnp.zeros((B, H), jnp.float32))
        _, x = jax.lax.scan(step, init, x)

    return x[-1] @ params["fc_w_t"] + params["fc_b"]


if __name__ == "__main__":
    vocab_size, embedding_dim, hidden_dim = 50, 32, 32
    num_layers, num_classes = 2, 3
    batch, seq_len = 2, 8

    key = jax.random.PRNGKey(0)
    pkey, xkey = jax.random.split(key)
    params = init_params(pkey, vocab_size, embedding_dim, hidden_dim,
                         num_layers, num_classes)
    token_ids = jax.random.randint(xkey, (batch, seq_len), 0, vocab_size,
                                   dtype=jnp.int32)

    logits = tweet_lstm_forward(token_ids, params)
    logits = jax.block_until_ready(logits)

    ref = jax.block_until_ready(reference_forward(token_ids, params))
    assert logits.shape == (batch, num_classes)
    np.testing.assert_allclose(np.asarray(logits), np.asarray(ref),
                               rtol=1e-4, atol=1e-4)
    print("KERNEL_OK")
</pallas_src>

<mosaic_0001>
module attributes {stable_mosaic.version = 11 : i64} {
  func.func @_tweet_lstm_fc_kernel(%arg0: i32, %arg1: memref<64x32xf32, #tpu.memory_space<vmem>>, %arg2: memref<32x128xf32, #tpu.memory_space<vmem>>, %arg3: memref<32x128xf32, #tpu.memory_space<vmem>>, %arg4: memref<1x128xf32, #tpu.memory_space<vmem>>, %arg5: memref<32x128xf32, #tpu.memory_space<vmem>>, %arg6: memref<32x128xf32, #tpu.memory_space<vmem>>, %arg7: memref<1x128xf32, #tpu.memory_space<vmem>>, %arg8: memref<32x128xf32, #tpu.memory_space<vmem>>, %arg9: memref<1x128xf32, #tpu.memory_space<vmem>>, %arg10: memref<8x128xf32, #tpu.memory_space<vmem>>, %arg11: memref<64x32xf32, #tpu.memory_space<vmem>>) attributes {dimension_semantics = [#tpu.dimension_semantics<arbitrary>], iteration_bounds = array<i64: 1>, scalar_prefetch = 0 : i64, scratch_operands = 1 : i64, tpu.core_type = #tpu.core_type<tc>, window_params = [{pipeline_mode = #tpu.pipeline_mode<synchronous>, transform_indices = @transform_0, window_bounds = array<i64: 64, 32>}, {pipeline_mode = #tpu.pipeline_mode<synchronous>, transform_indices = @transform_1, window_bounds = array<i64: 32, 128>}, {pipeline_mode = #tpu.pipeline_mode<synchronous>, transform_indices = @transform_2, window_bounds = array<i64: 32, 128>}, {pipeline_mode = #tpu.pipeline_mode<synchronous>, transform_indices = @transform_3, window_bounds = array<i64: 1, 128>}, {pipeline_mode = #tpu.pipeline_mode<synchronous>, transform_indices = @transform_4, window_bounds = array<i64: 32, 128>}, {pipeline_mode = #tpu.pipeline_mode<synchronous>, transform_indices = @transform_5, window_bounds = array<i64: 32, 128>}, {pipeline_mode = #tpu.pipeline_mode<synchronous>, transform_indices = @transform_6, window_bounds = array<i64: 1, 128>}, {pipeline_mode = #tpu.pipeline_mode<synchronous>, transform_indices = @transform_7, window_bounds = array<i64: 32, 128>}, {pipeline_mode = #tpu.pipeline_mode<synchronous>, transform_indices = @transform_8, window_bounds = array<i64: 1, 128>}, {pipeline_mode = #tpu.pipeline_mode<synchronous>, transform_indices = @transform_9, window_bounds = array<i64: 8, 128>}]} {
    %c0 = arith.constant 0 : index
    %c0_0 = arith.constant 0 : index
    %0 = vector.load %arg2[%c0, %c0_0] : memref<32x128xf32, #tpu.memory_space<vmem>>, vector<32x128xf32>
    %c0_1 = arith.constant 0 : index
    %c0_2 = arith.constant 0 : index
    %1 = vector.load %arg3[%c0_1, %c0_2] : memref<32x128xf32, #tpu.memory_space<vmem>>, vector<32x128xf32>
    %c0_3 = arith.constant 0 : index
    %c0_4 = arith.constant 0 : index
    %2 = vector.load %arg4[%c0_3, %c0_4] : memref<1x128xf32, #tpu.memory_space<vmem>>, vector<1x128xf32>
    %c0_5 = arith.constant 0 : index
    %c0_6 = arith.constant 0 : index
    %3 = vector.load %arg1[%c0_5, %c0_6] : memref<64x32xf32, #tpu.memory_space<vmem>>, vector<64x32xf32>
    %cst = arith.constant dense<0.000000e+00> : vector<64x128xf32>
    %4 = tpu.matmul %3, %0, %cst {dimension_numbers = #tpu.dot_dimension_numbers<[1], [0], [0], [1], [0, 0, 1, 1], [], []>} : vector<64x32xf32>, vector<32x128xf32>, vector<64x128xf32> -> vector<64x128xf32>
    %5 = vector.broadcast %2 : vector<1x128xf32> to vector<64x128xf32>
    %6 = arith.addf %4, %5 : vector<64x128xf32>
    %cst_7 = arith.constant 0.000000e+00 : f32
    %7 = vector.broadcast %cst_7 : f32 to vector<8x32xf32>
    %8 = vector.extract_strided_slice %6 {offsets = [0, 0], sizes = [8, 128], strides = [1, 1]} : vector<64x128xf32> to vector<8x128xf32>
    %9 = vector.extract_strided_slice %8 {offsets = [0, 0], sizes = [8, 32], strides = [1, 1]} : vector<8x128xf32> to vector<8x32xf32>
    %10 = arith.negf %9 : vector<8x32xf32>
    %11 = math.exp %10 : vector<8x32xf32>
    %cst_8 = arith.constant 1.000000e+00 : f32
    %12 = vector.broadcast %cst_8 : f32 to vector<8x32xf32>
    %13 = arith.addf %12, %11 : vector<8x32xf32>
    %14 = arith.divf %12, %13 : vector<8x32xf32>
    %15 = vector.extract_strided_slice %8 {offsets = [0, 32], sizes = [8, 32], strides = [1, 1]} : vector<8x128xf32> to vector<8x32xf32>
    %16 = arith.negf %15 : vector<8x32xf32>
    %17 = math.exp %16 : vector<8x32xf32>
    %cst_9 = arith.constant 1.000000e+00 : f32
    %18 = vector.broadcast %cst_9 : f32 to vector<8x32xf32>
    %19 = arith.addf %18, %17 : vector<8x32xf32>
    %20 = arith.divf %18, %19 : vector<8x32xf32>
    %21 = vector.extract_strided_slice %8 {offsets = [0, 64], sizes = [8, 32], strides = [1, 1]} : vector<8x128xf32> to vector<8x32xf32>
    %22 = math.tanh %21 : vector<8x32xf32>
    %23 = vector.extract_strided_slice %8 {offsets = [0, 96], sizes = [8, 32], strides = [1, 1]} : vector<8x128xf32> to vector<8x32xf32>
    %24 = arith.negf %23 : vector<8x32xf32>
    %25 = math.exp %24 : vector<8x32xf32>
    %cst_10 = arith.constant 1.000000e+00 : f32
    %26 = vector.broadcast %cst_10 : f32 to vector<8x32xf32>
    %27 = arith.addf %26, %25 : vector<8x32xf32>
    %28 = arith.divf %26, %27 : vector<8x32xf32>
    %29 = arith.mulf %20, %7 : vector<8x32xf32>
    %30 = arith.mulf %14, %22 : vector<8x32xf32>
    %31 = arith.addf %29, %30 : vector<8x32xf32>
    %32 = math.tanh %31 : vector<8x32xf32>
    %33 = arith.mulf %28, %32 : vector<8x32xf32>
    %c0_11 = arith.constant 0 : index
    %c0_12 = arith.constant 0 : index
    %34 = vector.load %arg11[%c0_11, %c0_12] : memref<64x32xf32, #tpu.memory_space<vmem>>, vector<8x32xf32>
    tpu.vector_store %arg11[%c0_11, %c0_12], %33 {strides = array<i32>} : memref<64x32xf32, #tpu.memory_space<vmem>>, vector<8x32xf32>,
    %35 = vector.extract_strided_slice %6 {offsets = [8, 0], sizes = [8, 128], strides = [1, 1]} : vector<64x128xf32> to vector<8x128xf32>
    %cst_13 = arith.constant dense<0.000000e+00> : vector<8x128xf32>
    %36 = tpu.matmul %33, %1, %cst_13 {dimension_numbers = #tpu.dot_dimension_numbers<[1], [0], [0], [1], [0, 0, 1, 1], [], []>} : vector<8x32xf32>, vector<32x128xf32>, vector<8x128xf32> -> vector<8x128xf32>
    %37 = arith.addf %35, %36 : vector<8x128xf32>
    %38 = vector.extract_strided_slice %37 {offsets = [0, 0], sizes = [8, 32], strides = [1, 1]} : vector<8x128xf32> to vector<8x32xf32>
    %39 = arith.negf %38 : vector<8x32xf32>
    %40 = math.exp %39 : vector<8x32xf32>
    %cst_14 = arith.constant 1.000000e+00 : f32
    %41 = vector.broadcast %cst_14 : f32 to vector<8x32xf32>
    %42 = arith.addf %41, %40 : vector<8x32xf32>
    %43 = arith.divf %41, %42 : vector<8x32xf32>
    %44 = vector.extract_strided_slice %37 {offsets = [0, 32], sizes = [8, 32], strides = [1, 1]} : vector<8x128xf32> to vector<8x32xf32>
    %45 = arith.negf %44 : vector<8x32xf32>
    %46 = math.exp %45 : vector<8x32xf32>
    %cst_15 = arith.constant 1.000000e+00 : f32
    %47 = vector.broadcast %cst_15 : f32 to vector<8x32xf32>
    %48 = arith.addf %47, %46 : vector<8x32xf32>
    %49 = arith.divf %47, %48 : vector<8x32xf32>
    %50 = vector.extract_strided_slice %37 {offsets = [0, 64], sizes = [8, 32], strides = [1, 1]} : vector<8x128xf32> to vector<8x32xf32>
    %51 = math.tanh %50 : vector<8x32xf32>
    %52 = vector.extract_strided_slice %37 {offsets = [0, 96], sizes = [8, 32], strides = [1, 1]} : vector<8x128xf32> to vector<8x32xf32>
    %53 = arith.negf %52 : vector<8x32xf32>
    %54 = math.exp %53 : vector<8x32xf32>
    %cst_16 = arith.constant 1.000000e+00 : f32
    %55 = vector.broadcast %cst_16 : f32 to vector<8x32xf32>
    %56 = arith.addf %55, %54 : vector<8x32xf32>
    %57 = arith.divf %55, %56 : vector<8x32xf32>
    %58 = arith.mulf %49, %31 : vector<8x32xf32>
    %59 = arith.mulf %43, %51 : vector<8x32xf32>
    %60 = arith.addf %58, %59 : vector<8x32xf32>
    %61 = math.tanh %60 : vector<8x32xf32>
    %62 = arith.mulf %57, %61 : vector<8x32xf32>
    %c8 = arith.constant 8 : index
    %c0_17 = arith.constant 0 : index
    %63 = vector.load %arg11[%c8, %c0_17] : memref<64x32xf32, #tpu.memory_space<vmem>>, vector<8x32xf32>
    tpu.vector_store %arg11[%c8, %c0_17], %62 {strides = array<i32>} : memref<64x32xf32, #tpu.memory_space<vmem>>, vector<8x32xf32>,
    %64 = vector.extract_strided_slice %6 {offsets = [16, 0], sizes = [8, 128], strides = [1, 1]} : vector<64x128xf32> to vector<8x128xf32>
    %cst_18 = arith.constant dense<0.000000e+00> : vector<8x128xf32>
    %65 = tpu.matmul %62, %1, %cst_18 {dimension_numbers = #tpu.dot_dimension_numbers<[1], [0], [0], [1], [0, 0, 1, 1], [], []>} : vector<8x32xf32>, vector<32x128xf32>, vector<8x128xf32> -> vector<8x128xf32>
    %66 = arith.addf %64, %65 : vector<8x128xf32>
    %67 = vector.extract_strided_slice %66 {offsets = [0, 0], sizes = [8, 32], strides = [1, 1]} : vector<8x128xf32> to vector<8x32xf32>
    %68 = arith.negf %67 : vector<8x32xf32>
    %69 = math.exp %68 : vector<8x32xf32>
    %cst_19 = arith.constant 1.000000e+00 : f32
    %70 = vector.broadcast %cst_19 : f32 to vector<8x32xf32>
    %71 = arith.addf %70, %69 : vector<8x32xf32>
    %72 = arith.divf %70, %71 : vector<8x32xf32>
    %73 = vector.extract_strided_slice %66 {offsets = [0, 32], sizes = [8, 32], strides = [1, 1]} : vector<8x128xf32> to vector<8x32xf32>
    %74 = arith.negf %73 : vector<8x32xf32>
    %75 = math.exp %74 : vector<8x32xf32>
    %cst_20 = arith.constant 1.000000e+00 : f32
    %76 = vector.broadcast %cst_20 : f32 to vector<8x32xf32>
    %77 = arith.addf %76, %75 : vector<8x32xf32>
    %78 = arith.divf %76, %77 : vector<8x32xf32>
    %79 = vector.extract_strided_slice %66 {offsets = [0, 64], sizes = [8, 32], strides = [1, 1]} : vector<8x128xf32> to vector<8x32xf32>
    %80 = math.tanh %79 : vector<8x32xf32>
    %81 = vector.extract_strided_slice %66 {offsets = [0, 96], sizes = [8, 32], strides = [1, 1]} : vector<8x128xf32> to vector<8x32xf32>
    %82 = arith.negf %81 : vector<8x32xf32>
    %83 = math.exp %82 : vector<8x32xf32>
    %cst_21 = arith.constant 1.000000e+00 : f32
    %84 = vector.broadcast %cst_21 : f32 to vector<8x32xf32>
    %85 = arith.addf %84, %83 : vector<8x32xf32>
    %86 = arith.divf %84, %85 : vector<8x32xf32>
    %87 = arith.mulf %78, %60 : vector<8x32xf32>
    %88 = arith.mulf %72, %80 : vector<8x32xf32>
    %89 = arith.addf %87, %88 : vector<8x32xf32>
    %90 = math.tanh %89 : vector<8x32xf32>
    %91 = arith.mulf %86, %90 : vector<8x32xf32>
    %c16 = arith.constant 16 : index
    %c0_22 = arith.constant 0 : index
    %92 = vector.load %arg11[%c16, %c0_22] : memref<64x32xf32, #tpu.memory_space<vmem>>, vector<8x32xf32>
    tpu.vector_store %arg11[%c16, %c0_22], %91 {strides = array<i32>} : memref<64x32xf32, #tpu.memory_space<vmem>>, vector<8x32xf32>,
    %93 = vector.extract_strided_slice %6 {offsets = [24, 0], sizes = [8, 128], strides = [1, 1]} : vector<64x128xf32> to vector<8x128xf32>
    %cst_23 = arith.constant dense<0.000000e+00> : vector<8x128xf32>
    %94 = tpu.matmul %91, %1, %cst_23 {dimension_numbers = #tpu.dot_dimension_numbers<[1], [0], [0], [1], [0, 0, 1, 1], [], []>} : vector<8x32xf32>, vector<32x128xf32>, vector<8x128xf32> -> vector<8x128xf32>
    %95 = arith.addf %93, %94 : vector<8x128xf32>
    %96 = vector.extract_strided_slice %95 {offsets = [0, 0], sizes = [8, 32], strides = [1, 1]} : vector<8x128xf32> to vector<8x32xf32>
    %97 = arith.negf %96 : vector<8x32xf32>
    %98 = math.exp %97 : vector<8x32xf32>
    %cst_24 = arith.constant 1.000000e+00 : f32
    %99 = vector.broadcast %cst_24 : f32 to vector<8x32xf32>
    %100 = arith.addf %99, %98 : vector<8x32xf32>
    %101 = arith.divf %99, %100 : vector<8x32xf32>
    %102 = vector.extract_strided_slice %95 {offsets = [0, 32], sizes = [8, 32], strides = [1, 1]} : vector<8x128xf32> to vector<8x32xf32>
    %103 = arith.negf %102 : vector<8x32xf32>
    %104 = math.exp %103 : vector<8x32xf32>
    %cst_25 = arith.constant 1.000000e+00 : f32
    %105 = vector.broadcast %cst_25 : f32 to vector<8x32xf32>
    %106 = arith.addf %105, %104 : vector<8x32xf32>
    %107 = arith.divf %105, %106 : vector<8x32xf32>
    %108 = vector.extract_strided_slice %95 {offsets = [0, 64], sizes = [8, 32], strides = [1, 1]} : vector<8x128xf32> to vector<8x32xf32>
    %109 = math.tanh %108 : vector<8x32xf32>
    %110 = vector.extract_strided_slice %95 {offsets = [0, 96], sizes = [8, 32], strides = [1, 1]} : vector<8x128xf32> to vector<8x32xf32>
    %111 = arith.negf %110 : vector<8x32xf32>
    %112 = math.exp %111 : vector<8x32xf32>
    %cst_26 = arith.constant 1.000000e+00 : f32
    %113 = vector.broadcast %cst_26 : f32 to vector<8x32xf32>
    %114 = arith.addf %113, %112 : vector<8x32xf32>
    %115 = arith.divf %113, %114 : vector<8x32xf32>
    %116 = arith.mulf %107, %89 : vector<8x32xf32>
    %117 = arith.mulf %101, %109 : vector<8x32xf32>
    %118 = arith.addf %116, %117 : vector<8x32xf32>
    %119 = math.tanh %118 : vector<8x32xf32>
    %120 = arith.mulf %115, %119 : vector<8x32xf32>
    %c24 = arith.constant 24 : index
    %c0_27 = arith.constant 0 : index
    %121 = vector.load %arg11[%c24, %c0_27] : memref<64x32xf32, #tpu.memory_space<vmem>>, vector<8x32xf32>
    tpu.vector_store %arg11[%c24, %c0_27], %120 {strides = array<i32>} : memref<64x32xf32, #tpu.memory_space<vmem>>, vector<8x32xf32>,
    %122 = vector.extract_strided_slice %6 {offsets = [32, 0], sizes = [8, 128], strides = [1, 1]} : vector<64x128xf32> to vector<8x128xf32>
    %cst_28 = arith.constant dense<0.000000e+00> : vector<8x128xf32>
    %123 = tpu.matmul %120, %1, %cst_28 {dimension_numbers = #tpu.dot_dimension_numbers<[1], [0], [0], [1], [0, 0, 1, 1], [], []>} : vector<8x32xf32>, vector<32x128xf32>, vector<8x128xf32> -> vector<8x128xf32>
    %124 = arith.addf %122, %123 : vector<8x128xf32>
    %125 = vector.extract_strided_slice %124 {offsets = [0, 0], sizes = [8, 32], strides = [1, 1]} : vector<8x128xf32> to vector<8x32xf32>
    %126 = arith.negf %125 : vector<8x32xf32>
    %127 = math.exp %126 : vector<8x32xf32>
    %cst_29 = arith.constant 1.000000e+00 : f32
    %128 = vector.broadcast %cst_29 : f32 to vector<8x32xf32>
    %129 = arith.addf %128, %127 : vector<8x32xf32>
    %130 = arith.divf %128, %129 : vector<8x32xf32>
    %131 = vector.extract_strided_slice %124 {offsets = [0, 32], sizes = [8, 32], strides = [1, 1]} : vector<8x128xf32> to vector<8x32xf32>
    %132 = arith.negf %131 : vector<8x32xf32>
    %133 = math.exp %132 : vector<8x32xf32>
    %cst_30 = arith.constant 1.000000e+00 : f32
    %134 = vector.broadcast %cst_30 : f32 to vector<8x32xf32>
    %135 = arith.addf %134, %133 : vector<8x32xf32>
    %136 = arith.divf %134, %135 : vector<8x32xf32>
    %137 = vector.extract_strided_slice %124 {offsets = [0, 64], sizes = [8, 32], strides = [1, 1]} : vector<8x128xf32> to vector<8x32xf32>
    %138 = math.tanh %137 : vector<8x32xf32>
    %139 = vector.extract_strided_slice %124 {offsets = [0, 96], sizes = [8, 32], strides = [1, 1]} : vector<8x128xf32> to vector<8x32xf32>
    %140 = arith.negf %139 : vector<8x32xf32>
    %141 = math.exp %140 : vector<8x32xf32>
    %cst_31 = arith.constant 1.000000e+00 : f32
    %142 = vector.broadcast %cst_31 : f32 to vector<8x32xf32>
    %143 = arith.addf %142, %141 : vector<8x32xf32>
    %144 = arith.divf %142, %143 : vector<8x32xf32>
    %145 = arith.mulf %136, %118 : vector<8x32xf32>
    %146 = arith.mulf %130, %138 : vector<8x32xf32>
    %147 = arith.addf %145, %146 : vector<8x32xf32>
    %148 = math.tanh %147 : vector<8x32xf32>
    %149 = arith.mulf %144, %148 : vector<8x32xf32>
    %c32 = arith.constant 32 : index
    %c0_32 = arith.constant 0 : index
    %150 = vector.load %arg11[%c32, %c0_32] : memref<64x32xf32, #tpu.memory_space<vmem>>, vector<8x32xf32>
    tpu.vector_store %arg11[%c32, %c0_32], %149 {strides = array<i32>} : memref<64x32xf32, #tpu.memory_space<vmem>>, vector<8x32xf32>,
    %151 = vector.extract_strided_slice %6 {offsets = [40, 0], sizes = [8, 128], strides = [1, 1]} : vector<64x128xf32> to vector<8x128xf32>
    %cst_33 = arith.constant dense<0.000000e+00> : vector<8x128xf32>
    %152 = tpu.matmul %149, %1, %cst_33 {dimension_numbers = #tpu.dot_dimension_numbers<[1], [0], [0], [1], [0, 0, 1, 1], [], []>} : vector<8x32xf32>, vector<32x128xf32>, vector<8x128xf32> -> vector<8x128xf32>
    %153 = arith.addf %151, %152 : vector<8x128xf32>
    %154 = vector.extract_strided_slice %153 {offsets = [0, 0], sizes = [8, 32], strides = [1, 1]} : vector<8x128xf32> to vector<8x32xf32>
    %155 = arith.negf %154 : vector<8x32xf32>
    %156 = math.exp %155 : vector<8x32xf32>
    %cst_34 = arith.constant 1.000000e+00 : f32
    %157 = vector.broadcast %cst_34 : f32 to vector<8x32xf32>
    %158 = arith.addf %157, %156 : vector<8x32xf32>
    %159 = arith.divf %157, %158 : vector<8x32xf32>
    %160 = vector.extract_strided_slice %153 {offsets = [0, 32], sizes = [8, 32], strides = [1, 1]} : vector<8x128xf32> to vector<8x32xf32>
    %161 = arith.negf %160 : vector<8x32xf32>
    %162 = math.exp %161 : vector<8x32xf32>
    %cst_35 = arith.constant 1.000000e+00 : f32
    %163 = vector.broadcast %cst_35 : f32 to vector<8x32xf32>
    %164 = arith.addf %163, %162 : vector<8x32xf32>
    %165 = arith.divf %163, %164 : vector<8x32xf32>
    %166 = vector.extract_strided_slice %153 {offsets = [0, 64], sizes = [8, 32], strides = [1, 1]} : vector<8x128xf32> to vector<8x32xf32>
    %167 = math.tanh %166 : vector<8x32xf32>
    %168 = vector.extract_strided_slice %153 {offsets = [0, 96], sizes = [8, 32], strides = [1, 1]} : vector<8x128xf32> to vector<8x32xf32>
    %169 = arith.negf %168 : vector<8x32xf32>
    %170 = math.exp %169 : vector<8x32xf32>
    %cst_36 = arith.constant 1.000000e+00 : f32
    %171 = vector.broadcast %cst_36 : f32 to vector<8x32xf32>
    %172 = arith.addf %171, %170 : vector<8x32xf32>
    %173 = arith.divf %171, %172 : vector<8x32xf32>
    %174 = arith.mulf %165, %147 : vector<8x32xf32>
    %175 = arith.mulf %159, %167 : vector<8x32xf32>
    %176 = arith.addf %174, %175 : vector<8x32xf32>
    %177 = math.tanh %176 : vector<8x32xf32>
    %178 = arith.mulf %173, %177 : vector<8x32xf32>
    %c40 = arith.constant 40 : index
    %c0_37 = arith.constant 0 : index
    %179 = vector.load %arg11[%c40, %c0_37] : memref<64x32xf32, #tpu.memory_space<vmem>>, vector<8x32xf32>
    tpu.vector_store %arg11[%c40, %c0_37], %178 {strides = array<i32>} : memref<64x32xf32, #tpu.memory_space<vmem>>, vector<8x32xf32>,
    %180 = vector.extract_strided_slice %6 {offsets = [48, 0], sizes = [8, 128], strides = [1, 1]} : vector<64x128xf32> to vector<8x128xf32>
    %cst_38 = arith.constant dense<0.000000e+00> : vector<8x128xf32>
    %181 = tpu.matmul %178, %1, %cst_38 {dimension_numbers = #tpu.dot_dimension_numbers<[1], [0], [0], [1], [0, 0, 1, 1], [], []>} : vector<8x32xf32>, vector<32x128xf32>, vector<8x128xf32> -> vector<8x128xf32>
    %182 = arith.addf %180, %181 : vector<8x128xf32>
    %183 = vector.extract_strided_slice %182 {offsets = [0, 0], sizes = [8, 32], strides = [1, 1]} : vector<8x128xf32> to vector<8x32xf32>
    %184 = arith.negf %183 : vector<8x32xf32>
    %185 = math.exp %184 : vector<8x32xf32>
    %cst_39 = arith.constant 1.000000e+00 : f32
    %186 = vector.broadcast %cst_39 : f32 to vector<8x32xf32>
    %187 = arith.addf %186, %185 : vector<8x32xf32>
    %188 = arith.divf %186, %187 : vector<8x32xf32>
    %189 = vector.extract_strided_slice %182 {offsets = [0, 32], sizes = [8, 32], strides = [1, 1]} : vector<8x128xf32> to vector<8x32xf32>
    %190 = arith.negf %189 : vector<8x32xf32>
    %191 = math.exp %190 : vector<8x32xf32>
    %cst_40 = arith.constant 1.000000e+00 : f32
    %192 = vector.broadcast %cst_40 : f32 to vector<8x32xf32>
    %193 = arith.addf %192, %191 : vector<8x32xf32>
    %194 = arith.divf %192, %193 : vector<8x32xf32>
    %195 = vector.extract_strided_slice %182 {offsets = [0, 64], sizes = [8, 32], strides = [1, 1]} : vector<8x128xf32> to vector<8x32xf32>
    %196 = math.tanh %195 : vector<8x32xf32>
    %197 = vector.extract_strided_slice %182 {offsets = [0, 96], sizes = [8, 32], strides = [1, 1]} : vector<8x128xf32> to vector<8x32xf32>
    %198 = arith.negf %197 : vector<8x32xf32>
    %199 = math.exp %198 : vector<8x32xf32>
    %cst_41 = arith.constant 1.000000e+00 : f32
    %200 = vector.broadcast %cst_41 : f32 to vector<8x32xf32>
    %201 = arith.addf %200, %199 : vector<8x32xf32>
    %202 = arith.divf %200, %201 : vector<8x32xf32>
    %203 = arith.mulf %194, %176 : vector<8x32xf32>
    %204 = arith.mulf %188, %196 : vector<8x32xf32>
    %205 = arith.addf %203, %204 : vector<8x32xf32>
    %206 = math.tanh %205 : vector<8x32xf32>
    %207 = arith.mulf %202, %206 : vector<8x32xf32>
    %c48 = arith.constant 48 : index
    %c0_42 = arith.constant 0 : index
    %208 = vector.load %arg11[%c48, %c0_42] : memref<64x32xf32, #tpu.memory_space<vmem>>, vector<8x32xf32>
    tpu.vector_store %arg11[%c48, %c0_42], %207 {strides = array<i32>} : memref<64x32xf32, #tpu.memory_space<vmem>>, vector<8x32xf32>,
    %209 = vector.extract_strided_slice %6 {offsets = [56, 0], sizes = [8, 128], strides = [1, 1]} : vector<64x128xf32> to vector<8x128xf32>
    %cst_43 = arith.constant dense<0.000000e+00> : vector<8x128xf32>
    %210 = tpu.matmul %207, %1, %cst_43 {dimension_numbers = #tpu.dot_dimension_numbers<[1], [0], [0], [1], [0, 0, 1, 1], [], []>} : vector<8x32xf32>, vector<32x128xf32>, vector<8x128xf32> -> vector<8x128xf32>
    %211 = arith.addf %209, %210 : vector<8x128xf32>
    %212 = vector.extract_strided_slice %211 {offsets = [0, 0], sizes = [8, 32], strides = [1, 1]} : vector<8x128xf32> to vector<8x32xf32>
    %213 = arith.negf %212 : vector<8x32xf32>
    %214 = math.exp %213 : vector<8x32xf32>
    %cst_44 = arith.constant 1.000000e+00 : f32
    %215 = vector.broadcast %cst_44 : f32 to vector<8x32xf32>
    %216 = arith.addf %215, %214 : vector<8x32xf32>
    %217 = arith.divf %215, %216 : vector<8x32xf32>
    %218 = vector.extract_strided_slice %211 {offsets = [0, 32], sizes = [8, 32], strides = [1, 1]} : vector<8x128xf32> to vector<8x32xf32>
    %219 = arith.negf %218 : vector<8x32xf32>
    %220 = math.exp %219 : vector<8x32xf32>
    %cst_45 = arith.constant 1.000000e+00 : f32
    %221 = vector.broadcast %cst_45 : f32 to vector<8x32xf32>
    %222 = arith.addf %221, %220 : vector<8x32xf32>
    %223 = arith.divf %221, %222 : vector<8x32xf32>
    %224 = vector.extract_strided_slice %211 {offsets = [0, 64], sizes = [8, 32], strides = [1, 1]} : vector<8x128xf32> to vector<8x32xf32>
    %225 = math.tanh %224 : vector<8x32xf32>
    %226 = vector.extract_strided_slice %211 {offsets = [0, 96], sizes = [8, 32], strides = [1, 1]} : vector<8x128xf32> to vector<8x32xf32>
    %227 = arith.negf %226 : vector<8x32xf32>
    %228 = math.exp %227 : vector<8x32xf32>
    %cst_46 = arith.constant 1.000000e+00 : f32
    %229 = vector.broadcast %cst_46 : f32 to vector<8x32xf32>
    %230 = arith.addf %229, %228 : vector<8x32xf32>
    %231 = arith.divf %229, %230 : vector<8x32xf32>
    %232 = arith.mulf %223, %205 : vector<8x32xf32>
    %233 = arith.mulf %217, %225 : vector<8x32xf32>
    %234 = arith.addf %232, %233 : vector<8x32xf32>
    %235 = math.tanh %234 : vector<8x32xf32>
    %236 = arith.mulf %231, %235 : vector<8x32xf32>
    %c56 = arith.constant 56 : index
    %c0_47 = arith.constant 0 : index
    %237 = vector.load %arg11[%c56, %c0_47] : memref<64x32xf32, #tpu.memory_space<vmem>>, vector<8x32xf32>
    tpu.vector_store %arg11[%c56, %c0_47], %236 {strides = array<i32>} : memref<64x32xf32, #tpu.memory_space<vmem>>, vector<8x32xf32>,
    %c0_48 = arith.constant 0 : index
    %c0_49 = arith.constant 0 : index
    %238 = vector.load %arg5[%c0_48, %c0_49] : memref<32x128xf32, #tpu.memory_space<vmem>>, vector<32x128xf32>
    %c0_50 = arith.constant 0 : index
    %c0_51 = arith.constant 0 : index
    %239 = vector.load %arg6[%c0_50, %c0_51] : memref<32x128xf32, #tpu.memory_space<vmem>>, vector<32x128xf32>
    %c0_52 = arith.constant 0 : index
    %c0_53 = arith.constant 0 : index
    %240 = vector.load %arg7[%c0_52, %c0_53] : memref<1x128xf32, #tpu.memory_space<vmem>>, vector<1x128xf32>
    %c0_54 = arith.constant 0 : index
    %c0_55 = arith.constant 0 : index
    %241 = vector.load %arg11[%c0_54, %c0_55] : memref<64x32xf32, #tpu.memory_space<vmem>>, vector<64x32xf32>
    %cst_56 = arith.constant dense<0.000000e+00> : vector<64x128xf32>
    %242 = tpu.matmul %241, %238, %cst_56 {dimension_numbers = #tpu.dot_dimension_numbers<[1], [0], [0], [1], [0, 0, 1, 1], [], []>} : vector<64x32xf32>, vector<32x128xf32>, vector<64x128xf32> -> vector<64x128xf32>
    %243 = vector.broadcast %240 : vector<1x128xf32> to vector<64x128xf32>
    %244 = arith.addf %242, %243 : vector<64x128xf32>
    %cst_57 = arith.constant 0.000000e+00 : f32
    %245 = vector.broadcast %cst_57 : f32 to vector<8x32xf32>
    %246 = vector.extract_strided_slice %244 {offsets = [0, 0], sizes = [8, 128], strides = [1, 1]} : vector<64x128xf32> to vector<8x128xf32>
    %247 = vector.extract_strided_slice %246 {offsets = [0, 0], sizes = [8, 32], strides = [1, 1]} : vector<8x128xf32> to vector<8x32xf32>
    %248 = arith.negf %247 : vector<8x32xf32>
    %249 = math.exp %248 : vector<8x32xf32>
    %cst_58 = arith.constant 1.000000e+00 : f32
    %250 = vector.broadcast %cst_58 : f32 to vector<8x32xf32>
    %251 = arith.addf %250, %249 : vector<8x32xf32>
    %252 = arith.divf %250, %251 : vector<8x32xf32>
    %253 = vector.extract_strided_slice %246 {offsets = [0, 32], sizes = [8, 32], strides = [1, 1]} : vector<8x128xf32> to vector<8x32xf32>
    %254 = arith.negf %253 : vector<8x32xf32>
    %255 = math.exp %254 : vector<8x32xf32>
    %cst_59 = arith.constant 1.000000e+00 : f32
    %256 = vector.broadcast %cst_59 : f32 to vector<8x32xf32>
    %257 = arith.addf %256, %255 : vector<8x32xf32>
    %258 = arith.divf %256, %257 : vector<8x32xf32>
    %259 = vector.extract_strided_slice %246 {offsets = [0, 64], sizes = [8, 32], strides = [1, 1]} : vector<8x128xf32> to vector<8x32xf32>
    %260 = math.tanh %259 : vector<8x32xf32>
    %261 = vector.extract_strided_slice %246 {offsets = [0, 96], sizes = [8, 32], strides = [1, 1]} : vector<8x128xf32> to vector<8x32xf32>
    %262 = arith.negf %261 : vector<8x32xf32>
    %263 = math.exp %262 : vector<8x32xf32>
    %cst_60 = arith.constant 1.000000e+00 : f32
    %264 = vector.broadcast %cst_60 : f32 to vector<8x32xf32>
    %265 = arith.addf %264, %263 : vector<8x32xf32>
    %266 = arith.divf %264, %265 : vector<8x32xf32>
    %267 = arith.mulf %258, %245 : vector<8x32xf32>
    %268 = arith.mulf %252, %260 : vector<8x32xf32>
    %269 = arith.addf %267, %268 : vector<8x32xf32>
    %270 = math.tanh %269 : vector<8x32xf32>
    %271 = arith.mulf %266, %270 : vector<8x32xf32>
    %272 = vector.extract_strided_slice %244 {offsets = [8, 0], sizes = [8, 128], strides = [1, 1]} : vector<64x128xf32> to vector<8x128xf32>
    %cst_61 = arith.constant dense<0.000000e+00> : vector<8x128xf32>
    %273 = tpu.matmul %271, %239, %cst_61 {dimension_numbers = #tpu.dot_dimension_numbers<[1], [0], [0], [1], [0, 0, 1, 1], [], []>} : vector<8x32xf32>, vector<32x128xf32>, vector<8x128xf32> -> vector<8x128xf32>
    %274 = arith.addf %272, %273 : vector<8x128xf32>
    %275 = vector.extract_strided_slice %274 {offsets = [0, 0], sizes = [8, 32], strides = [1, 1]} : vector<8x128xf32> to vector<8x32xf32>
    %276 = arith.negf %275 : vector<8x32xf32>
    %277 = math.exp %276 : vector<8x32xf32>
    %cst_62 = arith.constant 1.000000e+00 : f32
    %278 = vector.broadcast %cst_62 : f32 to vector<8x32xf32>
    %279 = arith.addf %278, %277 : vector<8x32xf32>
    %280 = arith.divf %278, %279 : vector<8x32xf32>
    %281 = vector.extract_strided_slice %274 {offsets = [0, 32], sizes = [8, 32], strides = [1, 1]} : vector<8x128xf32> to vector<8x32xf32>
    %282 = arith.negf %281 : vector<8x32xf32>
    %283 = math.exp %282 : vector<8x32xf32>
    %cst_63 = arith.constant 1.000000e+00 : f32
    %284 = vector.broadcast %cst_63 : f32 to vector<8x32xf32>
    %285 = arith.addf %284, %283 : vector<8x32xf32>
    %286 = arith.divf %284, %285 : vector<8x32xf32>
    %287 = vector.extract_strided_slice %274 {offsets = [0, 64], sizes = [8, 32], strides = [1, 1]} : vector<8x128xf32> to vector<8x32xf32>
    %288 = math.tanh %287 : vector<8x32xf32>
    %289 = vector.extract_strided_slice %274 {offsets = [0, 96], sizes = [8, 32], strides = [1, 1]} : vector<8x128xf32> to vector<8x32xf32>
    %290 = arith.negf %289 : vector<8x32xf32>
    %291 = math.exp %290 : vector<8x32xf32>
    %cst_64 = arith.constant 1.000000e+00 : f32
    %292 = vector.broadcast %cst_64 : f32 to vector<8x32xf32>
    %293 = arith.addf %292, %291 : vector<8x32xf32>
    %294 = arith.divf %292, %293 : vector<8x32xf32>
    %295 = arith.mulf %286, %269 : vector<8x32xf32>
    %296 = arith.mulf %280, %288 : vector<8x32xf32>
    %297 = arith.addf %295, %296 : vector<8x32xf32>
    %298 = math.tanh %297 : vector<8x32xf32>
    %299 = arith.mulf %294, %298 : vector<8x32xf32>
    %300 = vector.extract_strided_slice %244 {offsets = [16, 0], sizes = [8, 128], strides = [1, 1]} : vector<64x128xf32> to vector<8x128xf32>
    %cst_65 = arith.constant dense<0.000000e+00> : vector<8x128xf32>
    %301 = tpu.matmul %299, %239, %cst_65 {dimension_numbers = #tpu.dot_dimension_numbers<[1], [0], [0], [1], [0, 0, 1, 1], [], []>} : vector<8x32xf32>, vector<32x128xf32>, vector<8x128xf32> -> vector<8x128xf32>
    %302 = arith.addf %300, %301 : vector<8x128xf32>
    %303 = vector.extract_strided_slice %302 {offsets = [0, 0], sizes = [8, 32], strides = [1, 1]} : vector<8x128xf32> to vector<8x32xf32>
    %304 = arith.negf %303 : vector<8x32xf32>
    %305 = math.exp %304 : vector<8x32xf32>
    %cst_66 = arith.constant 1.000000e+00 : f32
    %306 = vector.broadcast %cst_66 : f32 to vector<8x32xf32>
    %307 = arith.addf %306, %305 : vector<8x32xf32>
    %308 = arith.divf %306, %307 : vector<8x32xf32>
    %309 = vector.extract_strided_slice %302 {offsets = [0, 32], sizes = [8, 32], strides = [1, 1]} : vector<8x128xf32> to vector<8x32xf32>
    %310 = arith.negf %309 : vector<8x32xf32>
    %311 = math.exp %310 : vector<8x32xf32>
    %cst_67 = arith.constant 1.000000e+00 : f32
    %312 = vector.broadcast %cst_67 : f32 to vector<8x32xf32>
    %313 = arith.addf %312, %311 : vector<8x32xf32>
    %314 = arith.divf %312, %313 : vector<8x32xf32>
    %315 = vector.extract_strided_slice %302 {offsets = [0, 64], sizes = [8, 32], strides = [1, 1]} : vector<8x128xf32> to vector<8x32xf32>
    %316 = math.tanh %315 : vector<8x32xf32>
    %317 = vector.extract_strided_slice %302 {offsets = [0, 96], sizes = [8, 32], strides = [1, 1]} : vector<8x128xf32> to vector<8x32xf32>
    %318 = arith.negf %317 : vector<8x32xf32>
    %319 = math.exp %318 : vector<8x32xf32>
    %cst_68 = arith.constant 1.000000e+00 : f32
    %320 = vector.broadcast %cst_68 : f32 to vector<8x32xf32>
    %321 = arith.addf %320, %319 : vector<8x32xf32>
    %322 = arith.divf %320, %321 : vector<8x32xf32>
    %323 = arith.mulf %314, %297 : vector<8x32xf32>
    %324 = arith.mulf %308, %316 : vector<8x32xf32>
    %325 = arith.addf %323, %324 : vector<8x32xf32>
    %326 = math.tanh %325 : vector<8x32xf32>
    %327 = arith.mulf %322, %326 : vector<8x32xf32>
    %328 = vector.extract_strided_slice %244 {offsets = [24, 0], sizes = [8, 128], strides = [1, 1]} : vector<64x128xf32> to vector<8x128xf32>
    %cst_69 = arith.constant dense<0.000000e+00> : vector<8x128xf32>
    %329 = tpu.matmul %327, %239, %cst_69 {dimension_numbers = #tpu.dot_dimension_numbers<[1], [0], [0], [1], [0, 0, 1, 1], [], []>} : vector<8x32xf32>, vector<32x128xf32>, vector<8x128xf32> -> vector<8x128xf32>
    %330 = arith.addf %328, %329 : vector<8x128xf32>
    %331 = vector.extract_strided_slice %330 {offsets = [0, 0], sizes = [8, 32], strides = [1, 1]} : vector<8x128xf32> to vector<8x32xf32>
    %332 = arith.negf %331 : vector<8x32xf32>
    %333 = math.exp %332 : vector<8x32xf32>
    %cst_70 = arith.constant 1.000000e+00 : f32
    %334 = vector.broadcast %cst_70 : f32 to vector<8x32xf32>
    %335 = arith.addf %334, %333 : vector<8x32xf32>
    %336 = arith.divf %334, %335 : vector<8x32xf32>
    %337 = vector.extract_strided_slice %330 {offsets = [0, 32], sizes = [8, 32], strides = [1, 1]} : vector<8x128xf32> to vector<8x32xf32>
    %338 = arith.negf %337 : vector<8x32xf32>
    %339 = math.exp %338 : vector<8x32xf32>
    %cst_71 = arith.constant 1.000000e+00 : f32
    %340 = vector.broadcast %cst_71 : f32 to vector<8x32xf32>
    %341 = arith.addf %340, %339 : vector<8x32xf32>
    %342 = arith.divf %340, %341 : vector<8x32xf32>
    %343 = vector.extract_strided_slice %330 {offsets = [0, 64], sizes = [8, 32], strides = [1, 1]} : vector<8x128xf32> to vector<8x32xf32>
    %344 = math.tanh %343 : vector<8x32xf32>
    %345 = vector.extract_strided_slice %330 {offsets = [0, 96], sizes = [8, 32], strides = [1, 1]} : vector<8x128xf32> to vector<8x32xf32>
    %346 = arith.negf %345 : vector<8x32xf32>
    %347 = math.exp %346 : vector<8x32xf32>
    %cst_72 = arith.constant 1.000000e+00 : f32
    %348 = vector.broadcast %cst_72 : f32 to vector<8x32xf32>
    %349 = arith.addf %348, %347 : vector<8x32xf32>
    %350 = arith.divf %348, %349 : vector<8x32xf32>
    %351 = arith.mulf %342, %325 : vector<8x32xf32>
    %352 = arith.mulf %336, %344 : vector<8x32xf32>
    %353 = arith.addf %351, %352 : vector<8x32xf32>
    %354 = math.tanh %353 : vector<8x32xf32>
    %355 = arith.mulf %350, %354 : vector<8x32xf32>
    %356 = vector.extract_strided_slice %244 {offsets = [32, 0], sizes = [8, 128], strides = [1, 1]} : vector<64x128xf32> to vector<8x128xf32>
    %cst_73 = arith.constant dense<0.000000e+00> : vector<8x128xf32>
    %357 = tpu.matmul %355, %239, %cst_73 {dimension_numbers = #tpu.dot_dimension_numbers<[1], [0], [0], [1], [0, 0, 1, 1], [], []>} : vector<8x32xf32>, vector<32x128xf32>, vector<8x128xf32> -> vector<8x128xf32>
    %358 = arith.addf %356, %357 : vector<8x128xf32>
    %359 = vector.extract_strided_slice %358 {offsets = [0, 0], sizes = [8, 32], strides = [1, 1]} : vector<8x128xf32> to vector<8x32xf32>
    %360 = arith.negf %359 : vector<8x32xf32>
    %361 = math.exp %360 : vector<8x32xf32>
    %cst_74 = arith.constant 1.000000e+00 : f32
    %362 = vector.broadcast %cst_74 : f32 to vector<8x32xf32>
    %363 = arith.addf %362, %361 : vector<8x32xf32>
    %364 = arith.divf %362, %363 : vector<8x32xf32>
    %365 = vector.extract_strided_slice %358 {offsets = [0, 32], sizes = [8, 32], strides = [1, 1]} : vector<8x128xf32> to vector<8x32xf32>
    %366 = arith.negf %365 : vector<8x32xf32>
    %367 = math.exp %366 : vector<8x32xf32>
    %cst_75 = arith.constant 1.000000e+00 : f32
    %368 = vector.broadcast %cst_75 : f32 to vector<8x32xf32>
    %369 = arith.addf %368, %367 : vector<8x32xf32>
    %370 = arith.divf %368, %369 : vector<8x32xf32>
    %371 = vector.extract_strided_slice %358 {offsets = [0, 64], sizes = [8, 32], strides = [1, 1]} : vector<8x128xf32> to vector<8x32xf32>
    %372 = math.tanh %371 : vector<8x32xf32>
    %373 = vector.extract_strided_slice %358 {offsets = [0, 96], sizes = [8, 32], strides = [1, 1]} : vector<8x128xf32> to vector<8x32xf32>
    %374 = arith.negf %373 : vector<8x32xf32>
    %375 = math.exp %374 : vector<8x32xf32>
    %cst_76 = arith.constant 1.000000e+00 : f32
    %376 = vector.broadcast %cst_76 : f32 to vector<8x32xf32>
    %377 = arith.addf %376, %375 : vector<8x32xf32>
    %378 = arith.divf %376, %377 : vector<8x32xf32>
    %379 = arith.mulf %370, %353 : vector<8x32xf32>
    %380 = arith.mulf %364, %372 : vector<8x32xf32>
    %381 = arith.addf %379, %380 : vector<8x32xf32>
    %382 = math.tanh %381 : vector<8x32xf32>
    %383 = arith.mulf %378, %382 : vector<8x32xf32>
    %384 = vector.extract_strided_slice %244 {offsets = [40, 0], sizes = [8, 128], strides = [1, 1]} : vector<64x128xf32> to vector<8x128xf32>
    %cst_77 = arith.constant dense<0.000000e+00> : vector<8x128xf32>
    %385 = tpu.matmul %383, %239, %cst_77 {dimension_numbers = #tpu.dot_dimension_numbers<[1], [0], [0], [1], [0, 0, 1, 1], [], []>} : vector<8x32xf32>, vector<32x128xf32>, vector<8x128xf32> -> vector<8x128xf32>
    %386 = arith.addf %384, %385 : vector<8x128xf32>
    %387 = vector.extract_strided_slice %386 {offsets = [0, 0], sizes = [8, 32], strides = [1, 1]} : vector<8x128xf32> to vector<8x32xf32>
    %388 = arith.negf %387 : vector<8x32xf32>
    %389 = math.exp %388 : vector<8x32xf32>
    %cst_78 = arith.constant 1.000000e+00 : f32
    %390 = vector.broadcast %cst_78 : f32 to vector<8x32xf32>
    %391 = arith.addf %390, %389 : vector<8x32xf32>
    %392 = arith.divf %390, %391 : vector<8x32xf32>
    %393 = vector.extract_strided_slice %386 {offsets = [0, 32], sizes = [8, 32], strides = [1, 1]} : vector<8x128xf32> to vector<8x32xf32>
    %394 = arith.negf %393 : vector<8x32xf32>
    %395 = math.exp %394 : vector<8x32xf32>
    %cst_79 = arith.constant 1.000000e+00 : f32
    %396 = vector.broadcast %cst_79 : f32 to vector<8x32xf32>
    %397 = arith.addf %396, %395 : vector<8x32xf32>
    %398 = arith.divf %396, %397 : vector<8x32xf32>
    %399 = vector.extract_strided_slice %386 {offsets = [0, 64], sizes = [8, 32], strides = [1, 1]} : vector<8x128xf32> to vector<8x32xf32>
    %400 = math.tanh %399 : vector<8x32xf32>
    %401 = vector.extract_strided_slice %386 {offsets = [0, 96], sizes = [8, 32], strides = [1, 1]} : vector<8x128xf32> to vector<8x32xf32>
    %402 = arith.negf %401 : vector<8x32xf32>
    %403 = math.exp %402 : vector<8x32xf32>
    %cst_80 = arith.constant 1.000000e+00 : f32
    %404 = vector.broadcast %cst_80 : f32 to vector<8x32xf32>
    %405 = arith.addf %404, %403 : vector<8x32xf32>
    %406 = arith.divf %404, %405 : vector<8x32xf32>
    %407 = arith.mulf %398, %381 : vector<8x32xf32>
    %408 = arith.mulf %392, %400 : vector<8x32xf32>
    %409 = arith.addf %407, %408 : vector<8x32xf32>
    %410 = math.tanh %409 : vector<8x32xf32>
    %411 = arith.mulf %406, %410 : vector<8x32xf32>
    %412 = vector.extract_strided_slice %244 {offsets = [48, 0], sizes = [8, 128], strides = [1, 1]} : vector<64x128xf32> to vector<8x128xf32>
    %cst_81 = arith.constant dense<0.000000e+00> : vector<8x128xf32>
    %413 = tpu.matmul %411, %239, %cst_81 {dimension_numbers = #tpu.dot_dimension_numbers<[1], [0], [0], [1], [0, 0, 1, 1], [], []>} : vector<8x32xf32>, vector<32x128xf32>, vector<8x128xf32> -> vector<8x128xf32>
    %414 = arith.addf %412, %413 : vector<8x128xf32>
    %415 = vector.extract_strided_slice %414 {offsets = [0, 0], sizes = [8, 32], strides = [1, 1]} : vector<8x128xf32> to vector<8x32xf32>
    %416 = arith.negf %415 : vector<8x32xf32>
    %417 = math.exp %416 : vector<8x32xf32>
    %cst_82 = arith.constant 1.000000e+00 : f32
    %418 = vector.broadcast %cst_82 : f32 to vector<8x32xf32>
    %419 = arith.addf %418, %417 : vector<8x32xf32>
    %420 = arith.divf %418, %419 : vector<8x32xf32>
    %421 = vector.extract_strided_slice %414 {offsets = [0, 32], sizes = [8, 32], strides = [1, 1]} : vector<8x128xf32> to vector<8x32xf32>
    %422 = arith.negf %421 : vector<8x32xf32>
    %423 = math.exp %422 : vector<8x32xf32>
    %cst_83 = arith.constant 1.000000e+00 : f32
    %424 = vector.broadcast %cst_83 : f32 to vector<8x32xf32>
    %425 = arith.addf %424, %423 : vector<8x32xf32>
    %426 = arith.divf %424, %425 : vector<8x32xf32>
    %427 = vector.extract_strided_slice %414 {offsets = [0, 64], sizes = [8, 32], strides = [1, 1]} : vector<8x128xf32> to vector<8x32xf32>
    %428 = math.tanh %427 : vector<8x32xf32>
    %429 = vector.extract_strided_slice %414 {offsets = [0, 96], sizes = [8, 32], strides = [1, 1]} : vector<8x128xf32> to vector<8x32xf32>
    %430 = arith.negf %429 : vector<8x32xf32>
    %431 = math.exp %430 : vector<8x32xf32>
    %cst_84 = arith.constant 1.000000e+00 : f32
    %432 = vector.broadcast %cst_84 : f32 to vector<8x32xf32>
    %433 = arith.addf %432, %431 : vector<8x32xf32>
    %434 = arith.divf %432, %433 : vector<8x32xf32>
    %435 = arith.mulf %426, %409 : vector<8x32xf32>
    %436 = arith.mulf %420, %428 : vector<8x32xf32>
    %437 = arith.addf %435, %436 : vector<8x32xf32>
    %438 = math.tanh %437 : vector<8x32xf32>
    %439 = arith.mulf %434, %438 : vector<8x32xf32>
    %440 = vector.extract_strided_slice %244 {offsets = [56, 0], sizes = [8, 128], strides = [1, 1]} : vector<64x128xf32> to vector<8x128xf32>
    %cst_85 = arith.constant dense<0.000000e+00> : vector<8x128xf32>
    %441 = tpu.matmul %439, %239, %cst_85 {dimension_numbers = #tpu.dot_dimension_numbers<[1], [0], [0], [1], [0, 0, 1, 1], [], []>} : vector<8x32xf32>, vector<32x128xf32>, vector<8x128xf32> -> vector<8x128xf32>
    %442 = arith.addf %440, %441 : vector<8x128xf32>
    %443 = vector.extract_strided_slice %442 {offsets = [0, 0], sizes = [8, 32], strides = [1, 1]} : vector<8x128xf32> to vector<8x32xf32>
    %444 = arith.negf %443 : vector<8x32xf32>
    %445 = math.exp %444 : vector<8x32xf32>
    %cst_86 = arith.constant 1.000000e+00 : f32
    %446 = vector.broadcast %cst_86 : f32 to vector<8x32xf32>
    %447 = arith.addf %446, %445 : vector<8x32xf32>
    %448 = arith.divf %446, %447 : vector<8x32xf32>
    %449 = vector.extract_strided_slice %442 {offsets = [0, 32], sizes = [8, 32], strides = [1, 1]} : vector<8x128xf32> to vector<8x32xf32>
    %450 = arith.negf %449 : vector<8x32xf32>
    %451 = math.exp %450 : vector<8x32xf32>
    %cst_87 = arith.constant 1.000000e+00 : f32
    %452 = vector.broadcast %cst_87 : f32 to vector<8x32xf32>
    %453 = arith.addf %452, %451 : vector<8x32xf32>
    %454 = arith.divf %452, %453 : vector<8x32xf32>
    %455 = vector.extract_strided_slice %442 {offsets = [0, 64], sizes = [8, 32], strides = [1, 1]} : vector<8x128xf32> to vector<8x32xf32>
    %456 = math.tanh %455 : vector<8x32xf32>
    %457 = vector.extract_strided_slice %442 {offsets = [0, 96], sizes = [8, 32], strides = [1, 1]} : vector<8x128xf32> to vector<8x32xf32>
    %458 = arith.negf %457 : vector<8x32xf32>
    %459 = math.exp %458 : vector<8x32xf32>
    %cst_88 = arith.constant 1.000000e+00 : f32
    %460 = vector.broadcast %cst_88 : f32 to vector<8x32xf32>
    %461 = arith.addf %460, %459 : vector<8x32xf32>
    %462 = arith.divf %460, %461 : vector<8x32xf32>
    %463 = arith.mulf %454, %437 : vector<8x32xf32>
    %464 = arith.mulf %448, %456 : vector<8x32xf32>
    %465 = arith.addf %463, %464 : vector<8x32xf32>
    %466 = math.tanh %465 : vector<8x32xf32>
    %467 = arith.mulf %462, %466 : vector<8x32xf32>
    %c0_89 = arith.constant 0 : index
    %c0_90 = arith.constant 0 : index
    %468 = vector.load %arg8[%c0_89, %c0_90] : memref<32x128xf32, #tpu.memory_space<vmem>>, vector<32x128xf32>
    %cst_91 = arith.constant dense<0.000000e+00> : vector<8x128xf32>
    %469 = tpu.matmul %467, %468, %cst_91 {dimension_numbers = #tpu.dot_dimension_numbers<[1], [0], [0], [1], [0, 0, 1, 1], [], []>} : vector<8x32xf32>, vector<32x128xf32>, vector<8x128xf32> -> vector<8x128xf32>
    %c0_92 = arith.constant 0 : index
    %c0_93 = arith.constant 0 : index
    %470 = vector.load %arg9[%c0_92, %c0_93] : memref<1x128xf32, #tpu.memory_space<vmem>>, vector<1x128xf32>
    %471 = vector.broadcast %470 : vector<1x128xf32> to vector<8x128xf32>
    %472 = arith.addf %469, %471 : vector<8x128xf32>
    %c0_94 = arith.constant 0 : index
    %c0_95 = arith.constant 0 : index
    %473 = vector.load %arg10[%c0_94, %c0_95] : memref<8x128xf32, #tpu.memory_space<vmem>>, vector<8x128xf32>
    tpu.vector_store %arg10[%c0_94, %c0_95], %472 {strides = array<i32>} : memref<8x128xf32, #tpu.memory_space<vmem>>, vector<8x128xf32>,
    return
  }
  func.func @transform_0(%arg0: i32) -> (i32, i32) {
    %c0_i32 = arith.constant 0 : i32
    %c0_i32_0 = arith.constant 0 : i32
    %c0_i32_1 = arith.constant 0 : i32
    return %c0_i32, %c0_i32_0 : i32, i32
  }
  func.func @transform_1(%arg0: i32) -> (i32, i32) {
    %c0_i32 = arith.constant 0 : i32
    %c0_i32_0 = arith.constant 0 : i32
    %c0_i32_1 = arith.constant 0 : i32
    return %c0_i32, %c0_i32_0 : i32, i32
  }
  func.func @transform_2(%arg0: i32) -> (i32, i32) {
    %c0_i32 = arith.constant 0 : i32
    %c0_i32_0 = arith.constant 0 : i32
    %c0_i32_1 = arith.constant 0 : i32
    return %c0_i32, %c0_i32_0 : i32, i32
  }
  func.func @transform_3(%arg0: i32) -> (i32, i32) {
    %c0_i32 = arith.constant 0 : i32
    %c0_i32_0 = arith.constant 0 : i32
    %c0_i32_1 = arith.constant 0 : i32
    return %c0_i32, %c0_i32_0 : i32, i32
  }
  func.func @transform_4(%arg0: i32) -> (i32, i32) {
    %c0_i32 = arith.constant 0 : i32
    %c0_i32_0 = arith.constant 0 : i32
    %c0_i32_1 = arith.constant 0 : i32
    return %c0_i32, %c0_i32_0 : i32, i32
  }
  func.func @transform_5(%arg0: i32) -> (i32, i32) {
    %c0_i32 = arith.constant 0 : i32
    %c0_i32_0 = arith.constant 0 : i32
    %c0_i32_1 = arith.constant 0 : i32
    return %c0_i32, %c0_i32_0 : i32, i32
  }
  func.func @transform_6(%arg0: i32) -> (i32, i32) {
    %c0_i32 = arith.constant 0 : i32
    %c0_i32_0 = arith.constant 0 : i32
    %c0_i32_1 = arith.constant 0 : i32
    return %c0_i32, %c0_i32_0 : i32, i32
  }
  func.func @transform_7(%arg0: i32) -> (i32, i32) {
    %c0_i32 = arith.constant 0 : i32
    %c0_i32_0 = arith.constant 0 : i32
    %c0_i32_1 = arith.constant 0 : i32
    return %c0_i32, %c0_i32_0 : i32, i32
  }
  func.func @transform_8(%arg0: i32) -> (i32, i32) {
    %c0_i32 = arith.constant 0 : i32
    %c0_i32_0 = arith.constant 0 : i32
    %c0_i32_1 = arith.constant 0 : i32
    return %c0_i32, %c0_i32_0 : i32, i32
  }
  func.func @transform_9(%arg0: i32) -> (i32, i32) {
    %c0_i32 = arith.constant 0 : i32
    %c0_i32_0 = arith.constant 0 : i32
    %c0_i32_1 = arith.constant 0 : i32
    return %c0_i32, %c0_i32_0 : i32, i32
  }
}

</mosaic_0001>

<llo_original>
// kernel: tpu_custom_call.1
$region0: #{tpu_custom_call.1}
  #allocation0 [shape = 'u32[]', space=smem, size = 0x4, offset = 0x4, fixed_abs, tag = 'smem constant byte address 0x4 - core index']
  #allocation1 [shape = 'u32[72,128]{1,0:T(1,128)}', space=vmem, size = 0x9000, scoped, tag = 'internal scratch']
  #allocation2 [shape = 'f32[64,32]{1,0:T(8,128)}', space=vmem, size = 0x8000, scoped, tag = 'scratch operand']
  %s0 = inlined_call_operand.vmem [shape: f32[64,32], index: 0, kind: input, shape index: {}]
  %s1 = inlined_call_operand.vmem [shape: f32[32,128], index: 1, kind: input, shape index: {}]
  %s2 = inlined_call_operand.vmem [shape: f32[32,128], index: 2, kind: input, shape index: {}]
  %s3 = inlined_call_operand.vmem [shape: f32[1,128], index: 3, kind: input, shape index: {}]
  %s4 = inlined_call_operand.vmem [shape: f32[32,128], index: 4, kind: input, shape index: {}]
  %s5 = inlined_call_operand.hbm [shape: f32[32,128], index: 5, kind: input, shape index: {}]
  %s6 = inlined_call_operand.vmem [shape: f32[1,128], index: 6, kind: input, shape index: {}]
  %s7 = inlined_call_operand.hbm [shape: f32[32,128], index: 7, kind: input, shape index: {}]
  %s8 = inlined_call_operand.vmem [shape: f32[1,128], index: 8, kind: input, shape index: {}]
  %s9 = inlined_call_operand.hbm [shape: f32[8,128], index: 9, kind: output, shape index: {}]
  %s10 = sld [smem:[#allocation0]]
  $region54: #{tpu_custom_call.1} parent=0
    _
  %s12 = ssub.s32 1, %s10
  %s13 = scalar_select 0, %s12, %s10
  $region1: #{tpu_custom_call.1} parent=0
    #allocation3 [shape = 'u8[16384]{0}', space=vmem, size = 0x4000, scoped, tag = 'input window, operand 5, single buffered']
    #allocation4 [shape = 's32[1]{0}', space=sflag, size = 0x4, scoped, tag = 'scoped memory for tpu_custom_call.1']
    #allocation5 [shape = 's32[1]{0}', space=sflag, size = 0x4, scoped, tag = 'scoped memory for tpu_custom_call.1']
    #allocation6 [shape = 'u8[16384]{0}', space=vmem, size = 0x4000, scoped, tag = 'input window, operand 7, single buffered']
    #allocation7 [shape = 's32[1]{0}', space=sflag, size = 0x4, scoped, tag = 'scoped memory for tpu_custom_call.1']
    #allocation8 [shape = 'u8[4096]{0}', space=vmem, size = 0x1000, scoped, tag = 'output window, operand 0, single buffered']
    %14 = vsyncpa [#allocation4], 0
    %15 = vsyncpa [#allocation7], 0
    %16 = vsyncpa [#allocation5], 0
    // Predicated region
    $region2: #{tpu_custom_call.1} parent=1 // pred_check
      _
    $region3: #{tpu_custom_call.1} parent=1 // pred_check_branch
      %18 = sbr.rel (0) target = $region5
    $region4: #{tpu_custom_call.1} parent=1 // pred_region
      _
    $region5: #{tpu_custom_call.1} parent=1 // pred_fallthru
      _
    // Predicated region
    $region6: #{tpu_custom_call.1} parent=1 // pred_check
      _
    $region7: #{tpu_custom_call.1} parent=1 // pred_check_branch
      %20 = sbr.rel (0) target = $region9
    $region8: #{tpu_custom_call.1} parent=1 // pred_region
      _
    $region9: #{tpu_custom_call.1} parent=1 // pred_fallthru
      _
    // Predicated region
    $region10: #{tpu_custom_call.1} parent=1 // pred_check
      _
    $region11: #{tpu_custom_call.1} parent=1 // pred_check_branch
      %22 = sbr.rel (0) target = $region13
    $region12: #{tpu_custom_call.1} parent=1 // pred_region
      _
    $region13: #{tpu_custom_call.1} parent=1 // pred_fallthru
      _
    // Predicated region
    $region14: #{tpu_custom_call.1} parent=1 // pred_check
      _
    $region15: #{tpu_custom_call.1} parent=1 // pred_check_branch
      %24 = sbr.rel (0) target = $region17
    $region16: #{tpu_custom_call.1} parent=1 // pred_region
      _
    $region17: #{tpu_custom_call.1} parent=1 // pred_fallthru
      _
    // Predicated region
    $region18: #{tpu_custom_call.1} parent=1 // pred_check
      _
    $region19: #{tpu_custom_call.1} parent=1 // pred_check_branch
      %26 = sbr.rel (0) target = $region21
    $region20: #{tpu_custom_call.1} parent=1 // pred_region
      _
    $region21: #{tpu_custom_call.1} parent=1 // pred_fallthru
      _
    // Predicated region
    $region22: #{tpu_custom_call.1} parent=1 // pred_check
      _
    $region23: #{tpu_custom_call.1} parent=1 // pred_check_branch
      %28 = sbr.rel (0) target = $region25
    $region24: #{tpu_custom_call.1} parent=1 // pred_region
      %30 = vsyncadd [#allocation4], 0
      %s31 = sshll.u32 %s5, 4
      %s32 = int_to_ptr.hbm [resolvable:$true] %s31
      %s33 = sshll.u32 [#allocation3], 4
      %s34 = int_to_ptr.vmem [resolvable:$true] %s33
      %39 = dma.hbm_to_vmem [thread:$0]  %s32, 512, %s34, [#allocation4], 128, 128, 8
    $region25: #{tpu_custom_call.1} parent=1 // pred_fallthru
      _
    // Predicated region
    $region26: #{tpu_custom_call.1} parent=1 // pred_check
      _
    $region27: #{tpu_custom_call.1} parent=1 // pred_check_branch
      %41 = sbr.rel (0) target = $region29
    $region28: #{tpu_custom_call.1} parent=1 // pred_region
      _
    $region29: #{tpu_custom_call.1} parent=1 // pred_fallthru
      _
    // Predicated region
    $region30: #{tpu_custom_call.1} parent=1 // pred_check
      _
    $region31: #{tpu_custom_call.1} parent=1 // pred_check_branch
      %43 = sbr.rel (0) target = $region33
    $region32: #{tpu_custom_call.1} parent=1 // pred_region
      %45 = vsyncadd [#allocation7], 0
      %s46 = sshll.u32 %s7, 4
      %s47 = int_to_ptr.hbm [resolvable:$true] %s46
      %s48 = sshll.u32 [#allocation6], 4
      %s49 = int_to_ptr.vmem [resolvable:$true] %s48
      %54 = dma.hbm_to_vmem [thread:$0]  %s47, 512, %s49, [#allocation7], 128, 128, 8
    $region33: #{tpu_custom_call.1} parent=1 // pred_fallthru
      _
    // Predicated region
    $region34: #{tpu_custom_call.1} parent=1 // pred_check
      _
    $region35: #{tpu_custom_call.1} parent=1 // pred_check_branch
      %56 = sbr.rel (0) target = $region37
    $region36: #{tpu_custom_call.1} parent=1 // pred_region
      _
    $region37: #{tpu_custom_call.1} parent=1 // pred_fallthru
      _
    // Predicated region
    $region38: #{tpu_custom_call.1} parent=1 // pred_check
      _
    $region39: #{tpu_custom_call.1} parent=1 // pred_check_branch
      %58 = sbr.rel (0) target = $region41
    $region40: #{tpu_custom_call.1} parent=1 // pred_region
      %60 = dma.done [#allocation4], 512
    $region41: #{tpu_custom_call.1} parent=1 // pred_fallthru
      _
    // Predicated region
    $region42: #{tpu_custom_call.1} parent=1 // pred_check
      _
    $region43: #{tpu_custom_call.1} parent=1 // pred_check_branch
      %62 = sbr.rel (0) target = $region45
    $region44: #{tpu_custom_call.1} parent=1 // pred_region
      %64 = dma.done [#allocation7], 512
    $region45: #{tpu_custom_call.1} parent=1 // pred_fallthru
      _
    %v65 = vld [vmem:[%s1] sm:$0xff]
    %v66 = vld [vmem:[%s1 + $0x8] sm:$0xff]
    %v67 = vld [vmem:[%s1 + $0x10] sm:$0xff]
    %v68 = vld [vmem:[%s1 + $0x18] sm:$0xff]
    %v69 = vld [vmem:[%s2] sm:$0xff]
    %v70 = vld [vmem:[%s2 + $0x8] sm:$0xff]
    %v71 = vld [vmem:[%s2 + $0x10] sm:$0xff]
    %v72 = vld [vmem:[%s2 + $0x18] sm:$0xff]
    %v73 = vld [vmem:[%s3] sm:$0x1]
    %v74 = vld [vmem:[%s0] sm:$0xff]
    %v75 = vld [vmem:[%s0 + $0x8] sm:$0xff]
    %v76 = vld [vmem:[%s0 + $0x10] sm:$0xff]
    %v77 = vld [vmem:[%s0 + $0x18] sm:$0xff]
    %v78 = vld [vmem:[%s0 + $0x20] sm:$0xff]
    %v79 = vld [vmem:[%s0 + $0x28] sm:$0xff]
    %v80 = vld [vmem:[%s0 + $0x30] sm:$0xff]
    %v81 = vld [vmem:[%s0 + $0x38] sm:$0xff]
    %v83 = vperm.slane %v73, 0
    %vm85 = vcmask 261120
    %v87 = vsel %vm85, %v74, 0
    %v90 = vsel %vm85, %v75, 0
    %v93 = vsel %vm85, %v76, 0
    %v96 = vsel %vm85, %v77, 0
    %v99 = vsel %vm85, %v78, 0
    %v102 = vsel %vm85, %v79, 0
    %v105 = vsel %vm85, %v80, 0
    %v108 = vsel %vm85, %v81, 0
    %110 = vmatpush.msra.mxu0 0.0
    %111 = vmatpush.msra.mxu0 0.0
    %112 = vmatpush.msra.mxu0 0.0
    %113 = vmatpush.msra.mxu0 0.0
    %114 = vmatpush.msra.mxu0 0.0
    %115 = vmatpush.msra.mxu0 0.0
    %116 = vmatpush.msra.mxu0 0.0
    %117 = vmatpush.msra.mxu0 0.0
    %118 = vmatpush.msra.mxu0 0.0
    %119 = vmatpush.msra.mxu0 0.0
    %120 = vmatpush.msra.mxu0 0.0
    %121 = vmatpush.msra.mxu0 0.0
    %122 = vmatpush.msra.mxu0 %v68
    %123 = vmatpush.msra.mxu0 %v67
    %124 = vmatpush.msra.mxu0 %v66
    %125 = vmatpush.msra.mxu0 %v65
    %126 = vmatmul.f32.gmra.mxu0 %v87
    %v127 = vpop.f32.mrf.mxu0
    %v128 = vadd.f32 %v83, %v127
    %129 = vmatmul.f32.gmra.mxu0 %v90
    %v130 = vpop.f32.mrf.mxu0
    %v131 = vadd.f32 %v83, %v130
    %132 = vmatmul.f32.gmra.mxu0 %v93
    %v133 = vpop.f32.mrf.mxu0
    %v134 = vadd.f32 %v83, %v133
    %135 = vmatmul.f32.gmra.mxu0 %v96
    %v136 = vpop.f32.mrf.mxu0
    %v137 = vadd.f32 %v83, %v136
    %138 = vmatmul.f32.gmra.mxu0 %v99
    %v139 = vpop.f32.mrf.mxu0
    %v140 = vadd.f32 %v83, %v139
    %141 = vmatmul.f32.gmra.mxu0 %v102
    %v142 = vpop.f32.mrf.mxu0
    %v143 = vadd.f32 %v83, %v142
    %144 = vmatmul.f32.gmra.mxu0 %v105
    %v145 = vpop.f32.mrf.mxu0
    %v146 = vadd.f32 %v83, %v145
    %147 = vmatmul.f32.gmra.mxu0 %v108
    %v148 = vpop.f32.mrf.mxu0
    %v149 = vadd.f32 %v83, %v148
    %150 = vdwg.mxu0
    %v151 = vxor.u32 %v128, 2147483648
    %v152 = vmul.f32 %v151, 1.442695
    %v153 = vpow.pop %v152
    %v154 = vadd.f32 %v153, 1.0
    %v155 = vrcp.pop %v154
    %v156 = vmul.f32 %v154, %v155
    %v157 = vsub.f32 1.0, %v156
    %v158 = vmul.f32 %v155, %v157
    %v159 = vadd.f32 %v155, %v158
    %vm160 = vweird.f32 %v154
    %vm161 = vweird.f32 %v155
    %vm162 = vmor %vm160, %vm161
    %v163 = vsel %vm162, %v155, %v159
    %v164 = vand.u32 2147483647, %v154
    %vm165 = vcmp.eq.f32.partialorder %v164, 8.507059e+37
    %v166 = vand.u32 %v154, 2147483648
    %v167 = vor.u32 1.1754944e-38, %v166
    %v168 = vsel %vm165, %v167, %v163
    %v169 = vmul.f32 1.0, %v168
    %v170 = vtanh.pop %v128
    %v171 = vmul.f32 %v169, 0.0
    %173 = vrot.lane.b32.xlu0 %v170, 64
    %v174 = vpop.permute.xlu0 %173
    %v176 = vmul.f32 %v169, %v174
    %178 = vrot.lane.b32.xlu0 %v176, 32
    %v179 = vpop.permute.xlu0 %178
    %v181 = vadd.f32 %v171, %v179
    %v182 = vtanh.pop %v181
    %184 = vrot.lane.b32.xlu0 %v182, 64
    %v185 = vpop.permute.xlu0 %184
    %v187 = vmul.f32 %v169, %v185
    %189 = vrot.lane.b32.xlu0 %v187, 32
    %v190 = vpop.permute.xlu0 %189
    %192 = vst.msk [vmem:[#allocation2] sm:$0xff] %vm85, %v190
    %v193 = vsel %vm85, %v190, 0
    %195 = vmatpush.msra.mxu0 0.0
    %196 = vmatpush.msra.mxu0 0.0
    %197 = vmatpush.msra.mxu0 0.0
    %198 = vmatpush.msra.mxu0 0.0
    %199 = vmatpush.msra.mxu0 0.0
    %200 = vmatpush.msra.mxu0 0.0
    %201 = vmatpush.msra.mxu0 0.0
    %202 = vmatpush.msra.mxu0 0.0
    %203 = vmatpush.msra.mxu0 0.0
    %204 = vmatpush.msra.mxu0 0.0
    %205 = vmatpush.msra.mxu0 0.0
    %206 = vmatpush.msra.mxu0 0.0
    %207 = vmatpush.msra.mxu0 %v72
    %208 = vmatpush.msra.mxu0 %v71
    %209 = vmatpush.msra.mxu0 %v70
    %210 = vmatpush.msra.mxu0 %v69
    %211 = vmatmul.f32.gmra.mxu0 %v193
    %v212 = vpop.f32.mrf.mxu0
    %v213 = vadd.f32 0.0, %v212
    %214 = vdwg.mxu0
    %v215 = vadd.f32 %v131, %v213
    %v216 = vxor.u32 %v215, 2147483648
    %v217 = vmul.f32 %v216, 1.442695
    %v218 = vpow.pop %v217
    %v219 = vadd.f32 %v218, 1.0
    %v220 = vrcp.pop %v219
    %v221 = vmul.f32 %v219, %v220
    %v222 = vsub.f32 1.0, %v221
    %v223 = vmul.f32 %v220, %v222
    %v224 = vadd.f32 %v220, %v223
    %vm225 = vweird.f32 %v219
    %vm226 = vweird.f32 %v220
    %vm227 = vmor %vm225, %vm226
    %v228 = vsel %vm227, %v220, %v224
    %v229 = vand.u32 2147483647, %v219
    %vm230 = vcmp.eq.f32.partialorder %v229, 8.507059e+37
    %v231 = vand.u32 %v219, 2147483648
    %v232 = vor.u32 1.1754944e-38, %v231
    %v233 = vsel %vm230, %v232, %v228
    %v234 = vmul.f32 1.0, %v233
    %v235 = vtanh.pop %v215
    %v236 = vmul.f32 %v234, %v181
    %238 = vrot.lane.b32.xlu0 %v235, 64
    %v239 = vpop.permute.xlu0 %238
    %v241 = vmul.f32 %v234, %v239
    %243 = vrot.lane.b32.xlu0 %v241, 32
    %v244 = vpop.permute.xlu0 %243
    %v246 = vadd.f32 %v236, %v244
    %v247 = vtanh.pop %v246
    %249 = vrot.lane.b32.xlu0 %v247, 64
    %v250 = vpop.permute.xlu0 %249
    %v252 = vmul.f32 %v234, %v250
    %254 = vrot.lane.b32.xlu0 %v252, 32
    %v255 = vpop.permute.xlu0 %254
    %257 = vst.msk [vmem:[#allocation2 + $0x8] sm:$0xff] %vm85, %v255
    %v258 = vsel %vm85, %v255, 0
    %260 = vmatpush.msra.mxu0 0.0
    %261 = vmatpush.msra.mxu0 0.0
    %262 = vmatpush.msra.mxu0 0.0
    %263 = vmatpush.msra.mxu0 0.0
    %264 = vmatpush.msra.mxu0 0.0
    %265 = vmatpush.msra.mxu0 0.0
    %266 = vmatpush.msra.mxu0 0.0
    %267 = vmatpush.msra.mxu0 0.0
    %268 = vmatpush.msra.mxu0 0.0
    %269 = vmatpush.msra.mxu0 0.0
    %270 = vmatpush.msra.mxu0 0.0
    %271 = vmatpush.msra.mxu0 0.0
    %272 = vmatpush.msra.mxu0 %v72
    %273 = vmatpush.msra.mxu0 %v71
    %274 = vmatpush.msra.mxu0 %v70
    %275 = vmatpush.msra.mxu0 %v69
    %276 = vmatmul.f32.gmra.mxu0 %v258
    %v277 = vpop.f32.mrf.mxu0
    %v278 = vadd.f32 0.0, %v277
    %279 = vdwg.mxu0
    %v280 = vadd.f32 %v134, %v278
    %v281 = vxor.u32 %v280, 2147483648
    %v282 = vmul.f32 %v281, 1.442695
    %v283 = vpow.pop %v282
    %v284 = vadd.f32 %v283, 1.0
    %v285 = vrcp.pop %v284
    %v286 = vmul.f32 %v284, %v285
    %v287 = vsub.f32 1.0, %v286
    %v288 = vmul.f32 %v285, %v287
    %v289 = vadd.f32 %v285, %v288
    %vm290 = vweird.f32 %v284
    %vm291 = vweird.f32 %v285
    %vm292 = vmor %vm290, %vm291
    %v293 = vsel %vm292, %v285, %v289
    %v294 = vand.u32 2147483647, %v284
    %vm295 = vcmp.eq.f32.partialorder %v294, 8.507059e+37
    %v296 = vand.u32 %v284, 2147483648
    %v297 = vor.u32 1.1754944e-38, %v296
    %v298 = vsel %vm295, %v297, %v293
    %v299 = vmul.f32 1.0, %v298
    %v300 = vtanh.pop %v280
    %v301 = vmul.f32 %v299, %v246
    %303 = vrot.lane.b32.xlu0 %v300, 64
    %v304 = vpop.permute.xlu0 %303
    %v306 = vmul.f32 %v299, %v304
    %308 = vrot.lane.b32.xlu0 %v306, 32
    %v309 = vpop.permute.xlu0 %308
    %v311 = vadd.f32 %v301, %v309
    %v312 = vtanh.pop %v311
    %314 = vrot.lane.b32.xlu0 %v312, 64
    %v315 = vpop.permute.xlu0 %314
    %v317 = vmul.f32 %v299, %v315
    %319 = vrot.lane.b32.xlu0 %v317, 32
    %v320 = vpop.permute.xlu0 %319
    %322 = vst.msk [vmem:[#allocation2 + $0x10] sm:$0xff] %vm85, %v320
    %v323 = vsel %vm85, %v320, 0
    %325 = vmatpush.msra.mxu0 0.0
    %326 = vmatpush.msra.mxu0 0.0
    %327 = vmatpush.msra.mxu0 0.0
    %328 = vmatpush.msra.mxu0 0.0
    %329 = vmatpush.msra.mxu0 0.0
    %330 = vmatpush.msra.mxu0 0.0
    %331 = vmatpush.msra.mxu0 0.0
    %332 = vmatpush.msra.mxu0 0.0
    %333 = vmatpush.msra.mxu0 0.0
    %334 = vmatpush.msra.mxu0 0.0
    %335 = vmatpush.msra.mxu0 0.0
    %336 = vmatpush.msra.mxu0 0.0
    %337 = vmatpush.msra.mxu0 %v72
    %338 = vmatpush.msra.mxu0 %v71
    %339 = vmatpush.msra.mxu0 %v70
    %340 = vmatpush.msra.mxu0 %v69
    %341 = vmatmul.f32.gmra.mxu0 %v323
    %v342 = vpop.f32.mrf.mxu0
    %v343 = vadd.f32 0.0, %v342
    %344 = vdwg.mxu0
    %v345 = vadd.f32 %v137, %v343
    %v346 = vxor.u32 %v345, 2147483648
    %v347 = vmul.f32 %v346, 1.442695
    %v348 = vpow.pop %v347
    %v349 = vadd.f32 %v348, 1.0
    %v350 = vrcp.pop %v349
    %v351 = vmul.f32 %v349, %v350
    %v352 = vsub.f32 1.0, %v351
    %v353 = vmul.f32 %v350, %v352
    %v354 = vadd.f32 %v350, %v353
    %vm355 = vweird.f32 %v349
    %vm356 = vweird.f32 %v350
    %vm357 = vmor %vm355, %vm356
    %v358 = vsel %vm357, %v350, %v354
    %v359 = vand.u32 2147483647, %v349
    %vm360 = vcmp.eq.f32.partialorder %v359, 8.507059e+37
    %v361 = vand.u32 %v349, 2147483648
    %v362 = vor.u32 1.1754944e-38, %v361
    %v363 = vsel %vm360, %v362, %v358
    %v364 = vmul.f32 1.0, %v363
    %v365 = vtanh.pop %v345
    %v366 = vmul.f32 %v364, %v311
    %368 = vrot.lane.b32.xlu0 %v365, 64
    %v369 = vpop.permute.xlu0 %368
    %v371 = vmul.f32 %v364, %v369
    %373 = vrot.lane.b32.xlu0 %v371, 32
    %v374 = vpop.permute.xlu0 %373
    %v376 = vadd.f32 %v366, %v374
    %v377 = vtanh.pop %v376
    %379 = vrot.lane.b32.xlu0 %v377, 64
    %v380 = vpop.permute.xlu0 %379
    %v382 = vmul.f32 %v364, %v380
    %384 = vrot.lane.b32.xlu0 %v382, 32
    %v385 = vpop.permute.xlu0 %384
    %387 = vst.msk [vmem:[#allocation2 + $0x18] sm:$0xff] %vm85, %v385
    %v388 = vsel %vm85, %v385, 0
    %390 = vmatpush.msra.mxu0 0.0
    %391 = vmatpush.msra.mxu0 0.0
    %392 = vmatpush.msra.mxu0 0.0
    %393 = vmatpush.msra.mxu0 0.0
    %394 = vmatpush.msra.mxu0 0.0
    %395 = vmatpush.msra.mxu0 0.0
    %396 = vmatpush.msra.mxu0 0.0
    %397 = vmatpush.msra.mxu0 0.0
    %398 = vmatpush.msra.mxu0 0.0
    %399 = vmatpush.msra.mxu0 0.0
    %400 = vmatpush.msra.mxu0 0.0
    %401 = vmatpush.msra.mxu0 0.0
    %402 = vmatpush.msra.mxu0 %v72
    %403 = vmatpush.msra.mxu0 %v71
    %404 = vmatpush.msra.mxu0 %v70
    %405 = vmatpush.msra.mxu0 %v69
    %406 = vmatmul.f32.gmra.mxu0 %v388
    %v407 = vpop.f32.mrf.mxu0
    %v408 = vadd.f32 0.0, %v407
    %409 = vdwg.mxu0
    %v410 = vadd.f32 %v140, %v408
    %v411 = vxor.u32 %v410, 2147483648
    %v412 = vmul.f32 %v411, 1.442695
    %v413 = vpow.pop %v412
    %v414 = vadd.f32 %v413, 1.0
    %v415 = vrcp.pop %v414
    %v416 = vmul.f32 %v414, %v415
    %v417 = vsub.f32 1.0, %v416
    %v418 = vmul.f32 %v415, %v417
    %v419 = vadd.f32 %v415, %v418
    %vm420 = vweird.f32 %v414
    %vm421 = vweird.f32 %v415
    %vm422 = vmor %vm420, %vm421
    %v423 = vsel %vm422, %v415, %v419
    %v424 = vand.u32 2147483647, %v414
    %vm425 = vcmp.eq.f32.partialorder %v424, 8.507059e+37
    %v426 = vand.u32 %v414, 2147483648
    %v427 = vor.u32 1.1754944e-38, %v426
    %v428 = vsel %vm425, %v427, %v423
    %v429 = vmul.f32 1.0, %v428
    %v430 = vtanh.pop %v410
    %v431 = vmul.f32 %v429, %v376
    %433 = vrot.lane.b32.xlu0 %v430, 64
    %v434 = vpop.permute.xlu0 %433
    %v436 = vmul.f32 %v429, %v434
    %438 = vrot.lane.b32.xlu0 %v436, 32
    %v439 = vpop.permute.xlu0 %438
    %v441 = vadd.f32 %v431, %v439
    %v442 = vtanh.pop %v441
    %444 = vrot.lane.b32.xlu0 %v442, 64
    %v445 = vpop.permute.xlu0 %444
    %v447 = vmul.f32 %v429, %v445
    %449 = vrot.lane.b32.xlu0 %v447, 32
    %v450 = vpop.permute.xlu0 %449
    %452 = vst.msk [vmem:[#allocation2 + $0x20] sm:$0xff] %vm85, %v450
    %v453 = vsel %vm85, %v450, 0
    %455 = vmatpush.msra.mxu0 0.0
    %456 = vmatpush.msra.mxu0 0.0
    %457 = vmatpush.msra.mxu0 0.0
    %458 = vmatpush.msra.mxu0 0.0
    %459 = vmatpush.msra.mxu0 0.0
    %460 = vmatpush.msra.mxu0 0.0
    %461 = vmatpush.msra.mxu0 0.0
    %462 = vmatpush.msra.mxu0 0.0
    %463 = vmatpush.msra.mxu0 0.0
    %464 = vmatpush.msra.mxu0 0.0
    %465 = vmatpush.msra.mxu0 0.0
    %466 = vmatpush.msra.mxu0 0.0
    %467 = vmatpush.msra.mxu0 %v72
    %468 = vmatpush.msra.mxu0 %v71
    %469 = vmatpush.msra.mxu0 %v70
    %470 = vmatpush.msra.mxu0 %v69
    %471 = vmatmul.f32.gmra.mxu0 %v453
    %v472 = vpop.f32.mrf.mxu0
    %v473 = vadd.f32 0.0, %v472
    %474 = vdwg.mxu0
    %v475 = vadd.f32 %v143, %v473
    %v476 = vxor.u32 %v475, 2147483648
    %v477 = vmul.f32 %v476, 1.442695
    %v478 = vpow.pop %v477
    %v479 = vadd.f32 %v478, 1.0
    %v480 = vrcp.pop %v479
    %v481 = vmul.f32 %v479, %v480
    %v482 = vsub.f32 1.0, %v481
    %v483 = vmul.f32 %v480, %v482
    %v484 = vadd.f32 %v480, %v483
    %vm485 = vweird.f32 %v479
    %vm486 = vweird.f32 %v480
    %vm487 = vmor %vm485, %vm486
    %v488 = vsel %vm487, %v480, %v484
    %v489 = vand.u32 2147483647, %v479
    %vm490 = vcmp.eq.f32.partialorder %v489, 8.507059e+37
    %v491 = vand.u32 %v479, 2147483648
    %v492 = vor.u32 1.1754944e-38, %v491
    %v493 = vsel %vm490, %v492, %v488
    %v494 = vmul.f32 1.0, %v493
    %v495 = vtanh.pop %v475
    %v496 = vmul.f32 %v494, %v441
    %498 = vrot.lane.b32.xlu0 %v495, 64
    %v499 = vpop.permute.xlu0 %498
    %v501 = vmul.f32 %v494, %v499
    %503 = vrot.lane.b32.xlu0 %v501, 32
    %v504 = vpop.permute.xlu0 %503
    %v506 = vadd.f32 %v496, %v504
    %v507 = vtanh.pop %v506
    %509 = vrot.lane.b32.xlu0 %v507, 64
    %v510 = vpop.permute.xlu0 %509
    %v512 = vmul.f32 %v494, %v510
    %514 = vrot.lane.b32.xlu0 %v512, 32
    %v515 = vpop.permute.xlu0 %514
    %517 = vst.msk [vmem:[#allocation2 + $0x28] sm:$0xff] %vm85, %v515
    %v518 = vsel %vm85, %v515, 0
    %520 = vmatpush.msra.mxu0 0.0
    %521 = vmatpush.msra.mxu0 0.0
    %522 = vmatpush.msra.mxu0 0.0
    %523 = vmatpush.msra.mxu0 0.0
    %524 = vmatpush.msra.mxu0 0.0
    %525 = vmatpush.msra.mxu0 0.0
    %526 = vmatpush.msra.mxu0 0.0
    %527 = vmatpush.msra.mxu0 0.0
    %528 = vmatpush.msra.mxu0 0.0
    %529 = vmatpush.msra.mxu0 0.0
    %530 = vmatpush.msra.mxu0 0.0
    %531 = vmatpush.msra.mxu0 0.0
    %532 = vmatpush.msra.mxu0 %v72
    %533 = vmatpush.msra.mxu0 %v71
    %534 = vmatpush.msra.mxu0 %v70
    %535 = vmatpush.msra.mxu0 %v69
    %536 = vmatmul.f32.gmra.mxu0 %v518
    %v537 = vpop.f32.mrf.mxu0
    %v538 = vadd.f32 0.0, %v537
    %539 = vdwg.mxu0
    %v540 = vadd.f32 %v146, %v538
    %v541 = vxor.u32 %v540, 2147483648
    %v542 = vmul.f32 %v541, 1.442695
    %v543 = vpow.pop %v542
    %v544 = vadd.f32 %v543, 1.0
    %v545 = vrcp.pop %v544
    %v546 = vmul.f32 %v544, %v545
    %v547 = vsub.f32 1.0, %v546
    %v548 = vmul.f32 %v545, %v547
    %v549 = vadd.f32 %v545, %v548
    %vm550 = vweird.f32 %v544
    %vm551 = vweird.f32 %v545
    %vm552 = vmor %vm550, %vm551
    %v553 = vsel %vm552, %v545, %v549
    %v554 = vand.u32 2147483647, %v544
    %vm555 = vcmp.eq.f32.partialorder %v554, 8.507059e+37
    %v556 = vand.u32 %v544, 2147483648
    %v557 = vor.u32 1.1754944e-38, %v556
    %v558 = vsel %vm555, %v557, %v553
    %v559 = vmul.f32 1.0, %v558
    %v560 = vtanh.pop %v540
    %v561 = vmul.f32 %v559, %v506
    %563 = vrot.lane.b32.xlu0 %v560, 64
    %v564 = vpop.permute.xlu0 %563
    %v566 = vmul.f32 %v559, %v564
    %568 = vrot.lane.b32.xlu0 %v566, 32
    %v569 = vpop.permute.xlu0 %568
    %v571 = vadd.f32 %v561, %v569
    %v572 = vtanh.pop %v571
    %574 = vrot.lane.b32.xlu0 %v572, 64
    %v575 = vpop.permute.xlu0 %574
    %v577 = vmul.f32 %v559, %v575
    %579 = vrot.lane.b32.xlu0 %v577, 32
    %v580 = vpop.permute.xlu0 %579
    %582 = vst.msk [vmem:[#allocation2 + $0x30] sm:$0xff] %vm85, %v580
    %v583 = vsel %vm85, %v580, 0
    %585 = vmatpush.msra.mxu0 0.0
    %586 = vmatpush.msra.mxu0 0.0
    %587 = vmatpush.msra.mxu0 0.0
    %588 = vmatpush.msra.mxu0 0.0
    %589 = vmatpush.msra.mxu0 0.0
    %590 = vmatpush.msra.mxu0 0.0
    %591 = vmatpush.msra.mxu0 0.0
    %592 = vmatpush.msra.mxu0 0.0
    %593 = vmatpush.msra.mxu0 0.0
    %594 = vmatpush.msra.mxu0 0.0
    %595 = vmatpush.msra.mxu0 0.0
    %596 = vmatpush.msra.mxu0 0.0
    %597 = vmatpush.msra.mxu0 %v72
    %598 = vmatpush.msra.mxu0 %v71
    %599 = vmatpush.msra.mxu0 %v70
    %600 = vmatpush.msra.mxu0 %v69
    %601 = vmatmul.f32.gmra.mxu0 %v583
    %v602 = vpop.f32.mrf.mxu0
    %v603 = vadd.f32 0.0, %v602
    %604 = vdwg.mxu0
    %v605 = vadd.f32 %v149, %v603
    %v606 = vxor.u32 %v605, 2147483648
    %v607 = vmul.f32 %v606, 1.442695
    %v608 = vpow.pop %v607
    %v609 = vadd.f32 %v608, 1.0
    %v610 = vrcp.pop %v609
    %v611 = vmul.f32 %v609, %v610
    %v612 = vsub.f32 1.0, %v611
    %v613 = vmul.f32 %v610, %v612
    %v614 = vadd.f32 %v610, %v613
    %vm615 = vweird.f32 %v609
    %vm616 = vweird.f32 %v610
    %vm617 = vmor %vm615, %vm616
    %v618 = vsel %vm617, %v610, %v614
    %v619 = vand.u32 2147483647, %v609
    %vm620 = vcmp.eq.f32.partialorder %v619, 8.507059e+37
    %v621 = vand.u32 %v609, 2147483648
    %v622 = vor.u32 1.1754944e-38, %v621
    %v623 = vsel %vm620, %v622, %v618
    %v624 = vmul.f32 1.0, %v623
    %v625 = vtanh.pop %v605
    %v626 = vmul.f32 %v624, %v571
    %628 = vrot.lane.b32.xlu0 %v625, 64
    %v629 = vpop.permute.xlu0 %628
    %v631 = vmul.f32 %v624, %v629
    %633 = vrot.lane.b32.xlu0 %v631, 32
    %v634 = vpop.permute.xlu0 %633
    %v636 = vadd.f32 %v626, %v634
    %v637 = vtanh.pop %v636
    %639 = vrot.lane.b32.xlu0 %v637, 64
    %v640 = vpop.permute.xlu0 %639
    %v642 = vmul.f32 %v624, %v640
    %644 = vrot.lane.b32.xlu0 %v642, 32
    %v645 = vpop.permute.xlu0 %644
    %647 = vst.msk [vmem:[#allocation2 + $0x38] sm:$0xff] %vm85, %v645
    %v648 = vld [vmem:[%s4] sm:$0xff]
    %v649 = vld [vmem:[%s4 + $0x8] sm:$0xff]
    %v650 = vld [vmem:[%s4 + $0x10] sm:$0xff]
    %v651 = vld [vmem:[%s4 + $0x18] sm:$0xff]
    %v652 = vld [vmem:[#allocation3] sm:$0xff]
    %v653 = vld [vmem:[#allocation3 + $0x8] sm:$0xff]
    %v654 = vld [vmem:[#allocation3 + $0x10] sm:$0xff]
    %v655 = vld [vmem:[#allocation3 + $0x18] sm:$0xff]
    %v656 = vld [vmem:[%s6] sm:$0x1]
    %v657 = vld [vmem:[#allocation2] sm:$0xff]
    %v658 = vld [vmem:[#allocation2 + $0x8] sm:$0xff]
    %v659 = vld [vmem:[#allocation2 + $0x10] sm:$0xff]
    %v660 = vld [vmem:[#allocation2 + $0x18] sm:$0xff]
    %v661 = vld [vmem:[#allocation2 + $0x20] sm:$0xff]
    %v662 = vld [vmem:[#allocation2 + $0x28] sm:$0xff]
    %v663 = vld [vmem:[#allocation2 + $0x30] sm:$0xff]
    %v664 = vld [vmem:[#allocation2 + $0x38] sm:$0xff]
    %v666 = vperm.slane %v656, 0
    %v669 = vsel %vm85, %v657, 0
    %v672 = vsel %vm85, %v658, 0
    %v675 = vsel %vm85, %v659, 0
    %v678 = vsel %vm85, %v660, 0
    %v681 = vsel %vm85, %v661, 0
    %v684 = vsel %vm85, %v662, 0
    %v687 = vsel %vm85, %v663, 0
    %v690 = vsel %vm85, %v664, 0
    %692 = vmatpush.msra.mxu0 0.0
    %693 = vmatpush.msra.mxu0 0.0
    %694 = vmatpush.msra.mxu0 0.0
    %695 = vmatpush.msra.mxu0 0.0
    %696 = vmatpush.msra.mxu0 0.0
    %697 = vmatpush.msra.mxu0 0.0
    %698 = vmatpush.msra.mxu0 0.0
    %699 = vmatpush.msra.mxu0 0.0
    %700 = vmatpush.msra.mxu0 0.0
    %701 = vmatpush.msra.mxu0 0.0
    %702 = vmatpush.msra.mxu0 0.0
    %703 = vmatpush.msra.mxu0 0.0
    %704 = vmatpush.msra.mxu0 %v651
    %705 = vmatpush.msra.mxu0 %v650
    %706 = vmatpush.msra.mxu0 %v649
    %707 = vmatpush.msra.mxu0 %v648
    %708 = vmatmul.f32.gmra.mxu0 %v669
    %v709 = vpop.f32.mrf.mxu0
    %v710 = vadd.f32 %v666, %v709
    %711 = vmatmul.f32.gmra.mxu0 %v672
    %v712 = vpop.f32.mrf.mxu0
    %v713 = vadd.f32 %v666, %v712
    %714 = vmatmul.f32.gmra.mxu0 %v675
    %v715 = vpop.f32.mrf.mxu0
    %v716 = vadd.f32 %v666, %v715
    %717 = vmatmul.f32.gmra.mxu0 %v678
    %v718 = vpop.f32.mrf.mxu0
    %v719 = vadd.f32 %v666, %v718
    %720 = vmatmul.f32.gmra.mxu0 %v681
    %v721 = vpop.f32.mrf.mxu0
    %v722 = vadd.f32 %v666, %v721
    %723 = vmatmul.f32.gmra.mxu0 %v684
    %v724 = vpop.f32.mrf.mxu0
    %v725 = vadd.f32 %v666, %v724
    %726 = vmatmul.f32.gmra.mxu0 %v687
    %v727 = vpop.f32.mrf.mxu0
    %v728 = vadd.f32 %v666, %v727
    %729 = vmatmul.f32.gmra.mxu0 %v690
    %v730 = vpop.f32.mrf.mxu0
    %v731 = vadd.f32 %v666, %v730
    %732 = vdwg.mxu0
    %v733 = vxor.u32 %v710, 2147483648
    %v734 = vmul.f32 %v733, 1.442695
    %v735 = vpow.pop %v734
    %v736 = vadd.f32 %v735, 1.0
    %v737 = vrcp.pop %v736
    %v738 = vmul.f32 %v736, %v737
    %v739 = vsub.f32 1.0, %v738
    %v740 = vmul.f32 %v737, %v739
    %v741 = vadd.f32 %v737, %v740
    %vm742 = vweird.f32 %v736
    %vm743 = vweird.f32 %v737
    %vm744 = vmor %vm742, %vm743
    %v745 = vsel %vm744, %v737, %v741
    %v746 = vand.u32 2147483647, %v736
    %vm747 = vcmp.eq.f32.partialorder %v746, 8.507059e+37
    %v748 = vand.u32 %v736, 2147483648
    %v749 = vor.u32 1.1754944e-38, %v748
    %v750 = vsel %vm747, %v749, %v745
    %v751 = vmul.f32 1.0, %v750
    %v752 = vtanh.pop %v710
    %v753 = vmul.f32 %v751, 0.0
    %755 = vrot.lane.b32.xlu0 %v752, 64
    %v756 = vpop.permute.xlu0 %755
    %v758 = vmul.f32 %v751, %v756
    %760 = vrot.lane.b32.xlu0 %v758, 32
    %v761 = vpop.permute.xlu0 %760
    %v763 = vadd.f32 %v753, %v761
    %v764 = vtanh.pop %v763
    %766 = vrot.lane.b32.xlu0 %v764, 64
    %v767 = vpop.permute.xlu0 %766
    %v769 = vmul.f32 %v751, %v767
    %771 = vrot.lane.b32.xlu0 %v769, 32
    %v772 = vpop.permute.xlu0 %771
    %v773 = vsel %vm85, %v772, 0
    %775 = vmatpush.msra.mxu0 0.0
    %776 = vmatpush.msra.mxu0 0.0
    %777 = vmatpush.msra.mxu0 0.0
    %778 = vmatpush.msra.mxu0 0.0
    %779 = vmatpush.msra.mxu0 0.0
    %780 = vmatpush.msra.mxu0 0.0
    %781 = vmatpush.msra.mxu0 0.0
    %782 = vmatpush.msra.mxu0 0.0
    %783 = vmatpush.msra.mxu0 0.0
    %784 = vmatpush.msra.mxu0 0.0
    %785 = vmatpush.msra.mxu0 0.0
    %786 = vmatpush.msra.mxu0 0.0
    %787 = vmatpush.msra.mxu0 %v655
    %788 = vmatpush.msra.mxu0 %v654
    %789 = vmatpush.msra.mxu0 %v653
    %790 = vmatpush.msra.mxu0 %v652
    %791 = vmatmul.f32.gmra.mxu0 %v773
    %v792 = vpop.f32.mrf.mxu0
    %v793 = vadd.f32 0.0, %v792
    %794 = vdwg.mxu0
    %v795 = vadd.f32 %v713, %v793
    %v796 = vxor.u32 %v795, 2147483648
    %v797 = vmul.f32 %v796, 1.442695
    %v798 = vpow.pop %v797
    %v799 = vadd.f32 %v798, 1.0
    %v800 = vrcp.pop %v799
    %v801 = vmul.f32 %v799, %v800
    %v802 = vsub.f32 1.0, %v801
    %v803 = vmul.f32 %v800, %v802
    %v804 = vadd.f32 %v800, %v803
    %vm805 = vweird.f32 %v799
    %vm806 = vweird.f32 %v800
    %vm807 = vmor %vm805, %vm806
    %v808 = vsel %vm807, %v800, %v804
    %v809 = vand.u32 2147483647, %v799
    %vm810 = vcmp.eq.f32.partialorder %v809, 8.507059e+37
    %v811 = vand.u32 %v799, 2147483648
    %v812 = vor.u32 1.1754944e-38, %v811
    %v813 = vsel %vm810, %v812, %v808
    %v814 = vmul.f32 1.0, %v813
    %v815 = vtanh.pop %v795
    %v816 = vmul.f32 %v814, %v763
    %818 = vrot.lane.b32.xlu0 %v815, 64
    %v819 = vpop.permute.xlu0 %818
    %v821 = vmul.f32 %v814, %v819
    %823 = vrot.lane.b32.xlu0 %v821, 32
    %v824 = vpop.permute.xlu0 %823
    %v826 = vadd.f32 %v816, %v824
    %v827 = vtanh.pop %v826
    %829 = vrot.lane.b32.xlu0 %v827, 64
    %v830 = vpop.permute.xlu0 %829
    %v832 = vmul.f32 %v814, %v830
    %834 = vrot.lane.b32.xlu0 %v832, 32
    %v835 = vpop.permute.xlu0 %834
    %v836 = vsel %vm85, %v835, 0
    %838 = vmatpush.msra.mxu0 0.0
    %839 = vmatpush.msra.mxu0 0.0
    %840 = vmatpush.msra.mxu0 0.0
    %841 = vmatpush.msra.mxu0 0.0
    %842 = vmatpush.msra.mxu0 0.0
    %843 = vmatpush.msra.mxu0 0.0
    %844 = vmatpush.msra.mxu0 0.0
    %845 = vmatpush.msra.mxu0 0.0
    %846 = vmatpush.msra.mxu0 0.0
    %847 = vmatpush.msra.mxu0 0.0
    %848 = vmatpush.msra.mxu0 0.0
    %849 = vmatpush.msra.mxu0 0.0
    %850 = vmatpush.msra.mxu0 %v655
    %851 = vmatpush.msra.mxu0 %v654
    %852 = vmatpush.msra.mxu0 %v653
    %853 = vmatpush.msra.mxu0 %v652
    %854 = vmatmul.f32.gmra.mxu0 %v836
    %v855 = vpop.f32.mrf.mxu0
    %v856 = vadd.f32 0.0, %v855
    %857 = vdwg.mxu0
    %v858 = vadd.f32 %v716, %v856
    %v859 = vxor.u32 %v858, 2147483648
    %v860 = vmul.f32 %v859, 1.442695
    %v861 = vpow.pop %v860
    %v862 = vadd.f32 %v861, 1.0
    %v863 = vrcp.pop %v862
    %v864 = vmul.f32 %v862, %v863
    %v865 = vsub.f32 1.0, %v864
    %v866 = vmul.f32 %v863, %v865
    %v867 = vadd.f32 %v863, %v866
    %vm868 = vweird.f32 %v862
    %vm869 = vweird.f32 %v863
    %vm870 = vmor %vm868, %vm869
    %v871 = vsel %vm870, %v863, %v867
    %v872 = vand.u32 2147483647, %v862
    %vm873 = vcmp.eq.f32.partialorder %v872, 8.507059e+37
    %v874 = vand.u32 %v862, 2147483648
    %v875 = vor.u32 1.1754944e-38, %v874
    %v876 = vsel %vm873, %v875, %v871
    %v877 = vmul.f32 1.0, %v876
    %v878 = vtanh.pop %v858
    %v879 = vmul.f32 %v877, %v826
    %881 = vrot.lane.b32.xlu0 %v878, 64
    %v882 = vpop.permute.xlu0 %881
    %v884 = vmul.f32 %v877, %v882
    %886 = vrot.lane.b32.xlu0 %v884, 32
    %v887 = vpop.permute.xlu0 %886
    %v889 = vadd.f32 %v879, %v887
    %v890 = vtanh.pop %v889
    %892 = vrot.lane.b32.xlu0 %v890, 64
    %v893 = vpop.permute.xlu0 %892
    %v895 = vmul.f32 %v877, %v893
    %897 = vrot.lane.b32.xlu0 %v895, 32
    %v898 = vpop.permute.xlu0 %897
    %v899 = vsel %vm85, %v898, 0
    %901 = vmatpush.msra.mxu0 0.0
    %902 = vmatpush.msra.mxu0 0.0
    %903 = vmatpush.msra.mxu0 0.0
    %904 = vmatpush.msra.mxu0 0.0
    %905 = vmatpush.msra.mxu0 0.0
    %906 = vmatpush.msra.mxu0 0.0
    %907 = vmatpush.msra.mxu0 0.0
    %908 = vmatpush.msra.mxu0 0.0
    %909 = vmatpush.msra.mxu0 0.0
    %910 = vmatpush.msra.mxu0 0.0
    %911 = vmatpush.msra.mxu0 0.0
    %912 = vmatpush.msra.mxu0 0.0
    %913 = vmatpush.msra.mxu0 %v655
    %914 = vmatpush.msra.mxu0 %v654
    %915 = vmatpush.msra.mxu0 %v653
    %916 = vmatpush.msra.mxu0 %v652
    %917 = vmatmul.f32.gmra.mxu0 %v899
    %v918 = vpop.f32.mrf.mxu0
    %v919 = vadd.f32 0.0, %v918
    %920 = vdwg.mxu0
    %v921 = vadd.f32 %v719, %v919
    %v922 = vxor.u32 %v921, 2147483648
    %v923 = vmul.f32 %v922, 1.442695
    %v924 = vpow.pop %v923
    %v925 = vadd.f32 %v924, 1.0
    %v926 = vrcp.pop %v925
    %v927 = vmul.f32 %v925, %v926
    %v928 = vsub.f32 1.0, %v927
    %v929 = vmul.f32 %v926, %v928
    %v930 = vadd.f32 %v926, %v929
    %vm931 = vweird.f32 %v925
    %vm932 = vweird.f32 %v926
    %vm933 = vmor %vm931, %vm932
    %v934 = vsel %vm933, %v926, %v930
    %v935 = vand.u32 2147483647, %v925
    %vm936 = vcmp.eq.f32.partialorder %v935, 8.507059e+37
    %v937 = vand.u32 %v925, 2147483648
    %v938 = vor.u32 1.1754944e-38, %v937
    %v939 = vsel %vm936, %v938, %v934
    %v940 = vmul.f32 1.0, %v939
    %v941 = vtanh.pop %v921
    %v942 = vmul.f32 %v940, %v889
    %944 = vrot.lane.b32.xlu0 %v941, 64
    %v945 = vpop.permute.xlu0 %944
    %v947 = vmul.f32 %v940, %v945
    %949 = vrot.lane.b32.xlu0 %v947, 32
    %v950 = vpop.permute.xlu0 %949
    %v952 = vadd.f32 %v942, %v950
    %v953 = vtanh.pop %v952
    %955 = vrot.lane.b32.xlu0 %v953, 64
    %v956 = vpop.permute.xlu0 %955
    %v958 = vmul.f32 %v940, %v956
    %960 = vrot.lane.b32.xlu0 %v958, 32
    %v961 = vpop.permute.xlu0 %960
    %v962 = vsel %vm85, %v961, 0
    %964 = vmatpush.msra.mxu0 0.0
    %965 = vmatpush.msra.mxu0 0.0
    %966 = vmatpush.msra.mxu0 0.0
    %967 = vmatpush.msra.mxu0 0.0
    %968 = vmatpush.msra.mxu0 0.0
    %969 = vmatpush.msra.mxu0 0.0
    %970 = vmatpush.msra.mxu0 0.0
    %971 = vmatpush.msra.mxu0 0.0
    %972 = vmatpush.msra.mxu0 0.0
    %973 = vmatpush.msra.mxu0 0.0
    %974 = vmatpush.msra.mxu0 0.0
    %975 = vmatpush.msra.mxu0 0.0
    %976 = vmatpush.msra.mxu0 %v655
    %977 = vmatpush.msra.mxu0 %v654
    %978 = vmatpush.msra.mxu0 %v653
    %979 = vmatpush.msra.mxu0 %v652
    %980 = vmatmul.f32.gmra.mxu0 %v962
    %v981 = vpop.f32.mrf.mxu0
    %v982 = vadd.f32 0.0, %v981
    %983 = vdwg.mxu0
    %v984 = vadd.f32 %v722, %v982
    %v985 = vxor.u32 %v984, 2147483648
    %v986 = vmul.f32 %v985, 1.442695
    %v987 = vpow.pop %v986
    %v988 = vadd.f32 %v987, 1.0
    %v989 = vrcp.pop %v988
    %v990 = vmul.f32 %v988, %v989
    %v991 = vsub.f32 1.0, %v990
    %v992 = vmul.f32 %v989, %v991
    %v993 = vadd.f32 %v989, %v992
    %vm994 = vweird.f32 %v988
    %vm995 = vweird.f32 %v989
    %vm996 = vmor %vm994, %vm995
    %v997 = vsel %vm996, %v989, %v993
    %v998 = vand.u32 2147483647, %v988
    %vm999 = vcmp.eq.f32.partialorder %v998, 8.507059e+37
    %v1000 = vand.u32 %v988, 2147483648
    %v1001 = vor.u32 1.1754944e-38, %v1000
    %v1002 = vsel %vm999, %v1001, %v997
    %v1003 = vmul.f32 1.0, %v1002
    %v1004 = vtanh.pop %v984
    %v1005 = vmul.f32 %v1003, %v952
    %1007 = vrot.lane.b32.xlu0 %v1004, 64
    %v1008 = vpop.permute.xlu0 %1007
    %v1010 = vmul.f32 %v1003, %v1008
    %1012 = vrot.lane.b32.xlu0 %v1010, 32
    %v1013 = vpop.permute.xlu0 %1012
    %v1015 = vadd.f32 %v1005, %v1013
    %v1016 = vtanh.pop %v1015
    %1018 = vrot.lane.b32.xlu0 %v1016, 64
    %v1019 = vpop.permute.xlu0 %1018
    %v1021 = vmul.f32 %v1003, %v1019
    %1023 = vrot.lane.b32.xlu0 %v1021, 32
    %v1024 = vpop.permute.xlu0 %1023
    %v1025 = vsel %vm85, %v1024, 0
    %1027 = vmatpush.msra.mxu0 0.0
    %1028 = vmatpush.msra.mxu0 0.0
    %1029 = vmatpush.msra.mxu0 0.0
    %1030 = vmatpush.msra.mxu0 0.0
    %1031 = vmatpush.msra.mxu0 0.0
    %1032 = vmatpush.msra.mxu0 0.0
    %1033 = vmatpush.msra.mxu0 0.0
    %1034 = vmatpush.msra.mxu0 0.0
    %1035 = vmatpush.msra.mxu0 0.0
    %1036 = vmatpush.msra.mxu0 0.0
    %1037 = vmatpush.msra.mxu0 0.0
    %1038 = vmatpush.msra.mxu0 0.0
    %1039 = vmatpush.msra.mxu0 %v655
    %1040 = vmatpush.msra.mxu0 %v654
    %1041 = vmatpush.msra.mxu0 %v653
    %1042 = vmatpush.msra.mxu0 %v652
    %1043 = vmatmul.f32.gmra.mxu0 %v1025
    %v1044 = vpop.f32.mrf.mxu0
    %v1045 = vadd.f32 0.0, %v1044
    %1046 = vdwg.mxu0
    %v1047 = vadd.f32 %v725, %v1045
    %v1048 = vxor.u32 %v1047, 2147483648
    %v1049 = vmul.f32 %v1048, 1.442695
    %v1050 = vpow.pop %v1049
    %v1051 = vadd.f32 %v1050, 1.0
    %v1052 = vrcp.pop %v1051
    %v1053 = vmul.f32 %v1051, %v1052
    %v1054 = vsub.f32 1.0, %v1053
    %v1055 = vmul.f32 %v1052, %v1054
    %v1056 = vadd.f32 %v1052, %v1055
    %vm1057 = vweird.f32 %v1051
    %vm1058 = vweird.f32 %v1052
    %vm1059 = vmor %vm1057, %vm1058
    %v1060 = vsel %vm1059, %v1052, %v1056
    %v1061 = vand.u32 2147483647, %v1051
    %vm1062 = vcmp.eq.f32.partialorder %v1061, 8.507059e+37
    %v1063 = vand.u32 %v1051, 2147483648
    %v1064 = vor.u32 1.1754944e-38, %v1063
    %v1065 = vsel %vm1062, %v1064, %v1060
    %v1066 = vmul.f32 1.0, %v1065
    %v1067 = vtanh.pop %v1047
    %v1068 = vmul.f32 %v1066, %v1015
    %1070 = vrot.lane.b32.xlu0 %v1067, 64
    %v1071 = vpop.permute.xlu0 %1070
    %v1073 = vmul.f32 %v1066, %v1071
    %1075 = vrot.lane.b32.xlu0 %v1073, 32
    %v1076 = vpop.permute.xlu0 %1075
    %v1078 = vadd.f32 %v1068, %v1076
    %v1079 = vtanh.pop %v1078
    %1081 = vrot.lane.b32.xlu0 %v1079, 64
    %v1082 = vpop.permute.xlu0 %1081
    %v1084 = vmul.f32 %v1066, %v1082
    %1086 = vrot.lane.b32.xlu0 %v1084, 32
    %v1087 = vpop.permute.xlu0 %1086
    %v1088 = vsel %vm85, %v1087, 0
    %1090 = vmatpush.msra.mxu0 0.0
    %1091 = vmatpush.msra.mxu0 0.0
    %1092 = vmatpush.msra.mxu0 0.0
    %1093 = vmatpush.msra.mxu0 0.0
    %1094 = vmatpush.msra.mxu0 0.0
    %1095 = vmatpush.msra.mxu0 0.0
    %1096 = vmatpush.msra.mxu0 0.0
    %1097 = vmatpush.msra.mxu0 0.0
    %1098 = vmatpush.msra.mxu0 0.0
    %1099 = vmatpush.msra.mxu0 0.0
    %1100 = vmatpush.msra.mxu0 0.0
    %1101 = vmatpush.msra.mxu0 0.0
    %1102 = vmatpush.msra.mxu0 %v655
    %1103 = vmatpush.msra.mxu0 %v654
    %1104 = vmatpush.msra.mxu0 %v653
    %1105 = vmatpush.msra.mxu0 %v652
    %1106 = vmatmul.f32.gmra.mxu0 %v1088
    %v1107 = vpop.f32.mrf.mxu0
    %v1108 = vadd.f32 0.0, %v1107
    %1109 = vdwg.mxu0
    %v1110 = vadd.f32 %v728, %v1108
    %v1111 = vxor.u32 %v1110, 2147483648
    %v1112 = vmul.f32 %v1111, 1.442695
    %v1113 = vpow.pop %v1112
    %v1114 = vadd.f32 %v1113, 1.0
    %v1115 = vrcp.pop %v1114
    %v1116 = vmul.f32 %v1114, %v1115
    %v1117 = vsub.f32 1.0, %v1116
    %v1118 = vmul.f32 %v1115, %v1117
    %v1119 = vadd.f32 %v1115, %v1118
    %vm1120 = vweird.f32 %v1114
    %vm1121 = vweird.f32 %v1115
    %vm1122 = vmor %vm1120, %vm1121
    %v1123 = vsel %vm1122, %v1115, %v1119
    %v1124 = vand.u32 2147483647, %v1114
    %vm1125 = vcmp.eq.f32.partialorder %v1124, 8.507059e+37
    %v1126 = vand.u32 %v1114, 2147483648
    %v1127 = vor.u32 1.1754944e-38, %v1126
    %v1128 = vsel %vm1125, %v1127, %v1123
    %v1129 = vmul.f32 1.0, %v1128
    %v1130 = vtanh.pop %v1110
    %v1131 = vmul.f32 %v1129, %v1078
    %1133 = vrot.lane.b32.xlu0 %v1130, 64
    %v1134 = vpop.permute.xlu0 %1133
    %v1136 = vmul.f32 %v1129, %v1134
    %1138 = vrot.lane.b32.xlu0 %v1136, 32
    %v1139 = vpop.permute.xlu0 %1138
    %v1141 = vadd.f32 %v1131, %v1139
    %v1142 = vtanh.pop %v1141
    %1144 = vrot.lane.b32.xlu0 %v1142, 64
    %v1145 = vpop.permute.xlu0 %1144
    %v1147 = vmul.f32 %v1129, %v1145
    %1149 = vrot.lane.b32.xlu0 %v1147, 32
    %v1150 = vpop.permute.xlu0 %1149
    %v1151 = vsel %vm85, %v1150, 0
    %1153 = vmatpush.msra.mxu0 0.0
    %1154 = vmatpush.msra.mxu0 0.0
    %1155 = vmatpush.msra.mxu0 0.0
    %1156 = vmatpush.msra.mxu0 0.0
    %1157 = vmatpush.msra.mxu0 0.0
    %1158 = vmatpush.msra.mxu0 0.0
    %1159 = vmatpush.msra.mxu0 0.0
    %1160 = vmatpush.msra.mxu0 0.0
    %1161 = vmatpush.msra.mxu0 0.0
    %1162 = vmatpush.msra.mxu0 0.0
    %1163 = vmatpush.msra.mxu0 0.0
    %1164 = vmatpush.msra.mxu0 0.0
    %1165 = vmatpush.msra.mxu0 %v655
    %1166 = vmatpush.msra.mxu0 %v654
    %1167 = vmatpush.msra.mxu0 %v653
    %1168 = vmatpush.msra.mxu0 %v652
    %1169 = vmatmul.f32.gmra.mxu0 %v1151
    %v1170 = vpop.f32.mrf.mxu0
    %v1171 = vadd.f32 0.0, %v1170
    %1172 = vdwg.mxu0
    %v1173 = vadd.f32 %v731, %v1171
    %v1174 = vxor.u32 %v1173, 2147483648
    %v1175 = vmul.f32 %v1174, 1.442695
    %v1176 = vpow.pop %v1175
    %v1177 = vadd.f32 %v1176, 1.0
    %v1178 = vrcp.pop %v1177
    %v1179 = vmul.f32 %v1177, %v1178
    %v1180 = vsub.f32 1.0, %v1179
    %v1181 = vmul.f32 %v1178, %v1180
    %v1182 = vadd.f32 %v1178, %v1181
    %vm1183 = vweird.f32 %v1177
    %vm1184 = vweird.f32 %v1178
    %vm1185 = vmor %vm1183, %vm1184
    %v1186 = vsel %vm1185, %v1178, %v1182
    %v1187 = vand.u32 2147483647, %v1177
    %vm1188 = vcmp.eq.f32.partialorder %v1187, 8.507059e+37
    %v1189 = vand.u32 %v1177, 2147483648
    %v1190 = vor.u32 1.1754944e-38, %v1189
    %v1191 = vsel %vm1188, %v1190, %v1186
    %v1192 = vmul.f32 1.0, %v1191
    %v1193 = vtanh.pop %v1173
    %v1194 = vmul.f32 %v1192, %v1141
    %1196 = vrot.lane.b32.xlu0 %v1193, 64
    %v1197 = vpop.permute.xlu0 %1196
    %v1199 = vmul.f32 %v1192, %v1197
    %1201 = vrot.lane.b32.xlu0 %v1199, 32
    %v1202 = vpop.permute.xlu0 %1201
    %v1204 = vadd.f32 %v1194, %v1202
    %v1205 = vtanh.pop %v1204
    %1207 = vrot.lane.b32.xlu0 %v1205, 64
    %v1208 = vpop.permute.xlu0 %1207
    %v1210 = vmul.f32 %v1192, %v1208
    %v1211 = vld [vmem:[#allocation6] sm:$0xff]
    %v1212 = vld [vmem:[#allocation6 + $0x8] sm:$0xff]
    %v1213 = vld [vmem:[#allocation6 + $0x10] sm:$0xff]
    %v1214 = vld [vmem:[#allocation6 + $0x18] sm:$0xff]
    %v1215 = vld [vmem:[%s8] sm:$0x1]
    %v1217 = vperm.slane %v1215, 0
    %1220 = vrot.lane.b32.xlu0 %v1210, 32
    %v1221 = vpop.permute.xlu0 %1220
    %v1222 = vsel %vm85, %v1221, 0
    %1224 = vmatpush.msra.mxu0 0.0
    %1225 = vmatpush.msra.mxu0 0.0
    %1226 = vmatpush.msra.mxu0 0.0
    %1227 = vmatpush.msra.mxu0 0.0
    %1228 = vmatpush.msra.mxu0 0.0
    %1229 = vmatpush.msra.mxu0 0.0
    %1230 = vmatpush.msra.mxu0 0.0
    %1231 = vmatpush.msra.mxu0 0.0
    %1232 = vmatpush.msra.mxu0 0.0
    %1233 = vmatpush.msra.mxu0 0.0
    %1234 = vmatpush.msra.mxu0 0.0
    %1235 = vmatpush.msra.mxu0 0.0
    %1236 = vmatpush.msra.mxu0 %v1214
    %1237 = vmatpush.msra.mxu0 %v1213
    %1238 = vmatpush.msra.mxu0 %v1212
    %1239 = vmatpush.msra.mxu0 %v1211
    %1240 = vmatmul.f32.gmra.mxu0 %v1222
    %v1241 = vpop.f32.mrf.mxu0
    %v1242 = vadd.f32 %v1217, %v1241
    %1243 = vdwg.mxu0
    %1244 = vst [vmem:[#allocation8] sm:$0xff] %v1242
    // Predicated region
    $region46: #{tpu_custom_call.1} parent=1 // pred_check
      _
    $region47: #{tpu_custom_call.1} parent=1 // pred_check_branch
      %1246 = sbr.rel (0) target = $region49
    $region48: #{tpu_custom_call.1} parent=1 // pred_region
      %1248 = vsyncadd [#allocation5], 0
      %s1250 = sshll.u32 [#allocation8], 4
      %s1251 = int_to_ptr.vmem [resolvable:$true] %s1250
      %s1252 = sshll.u32 %s9, 4
      %s1253 = int_to_ptr.hbm [resolvable:$true] %s1252
      %1255 = dma.vmem_to_hbm [thread:$0]  %s1251, 128, %s1253, [#allocation5]
    $region49: #{tpu_custom_call.1} parent=1 // pred_fallthru
      _
    // Predicated region
    $region50: #{tpu_custom_call.1} parent=1 // pred_check
      _
    $region51: #{tpu_custom_call.1} parent=1 // pred_check_branch
      %1257 = sbr.rel (0) target = $region53
    $region52: #{tpu_custom_call.1} parent=1 // pred_region
      %1259 = dma.done [#allocation5], 128
    $region53: #{tpu_custom_call.1} parent=1 // pred_fallthru
      _
    %1260 = vsyncpa [#allocation4], 1
    %1261 = vsyncpa [#allocation7], 1
    %1262 = vsyncpa [#allocation5], 1

</llo_original>
